<compile_context>
chip_gen: v7x
topology: tpu7x:2x2x1
jax: 0.10.0
libtpu: 0.0.40
codegen_flags: <defaults>
</compile_context>

<pallas_src>
import numpy as np
import jax
import jax.numpy as jnp
from jax import lax
from jax.experimental import pallas as pl
from jax.experimental.pallas import tpu as pltpu

# ---- static module configuration (ROIPooler(output_size, scale, sampling_ratio, "ROIAlign")) ----
OUTPUT_SIZE = 4        # pooled size before the 2x2 max pool (must be even)
SCALE = 0.25           # 1 / feature stride
SAMPLING_RATIO = 2
ROIS_PER_STEP = 32     # B: ROIs per grid step; B*Ph = 128 lanes (use 64 on v6e/v7x)  [R1]
FEAT_DTYPE = jnp.bfloat16   # MXU feed; ~0.3-1% rel error vs f32 ROIAlign (inference-grade)


def _ceil_to(a, m):
    return -(-a // m) * m


def convert_boxes_to_pooler_format(box_lists):
    """JAX version of the torch helper: returns (M,5) pooler boxes plus batch-index / boxes."""
    batch_idx = jnp.concatenate(
        [jnp.full((b.shape[0],), i, dtype=jnp.int32) for i, b in enumerate(box_lists)]
    )
    boxes = jnp.concatenate([b.astype(jnp.float32) for b in box_lists], axis=0)
    pooler_fmt_boxes = jnp.concatenate(
        [batch_idx[:, None].astype(jnp.float32), boxes], axis=1
    )
    return pooler_fmt_boxes, batch_idx, boxes


def _make_roi_pooler_kernel(C, Wp, Hp, fH, fW, Ph, Pw, B, sr, c_chunk, feat_dtype):
    Pw2 = Pw // 2
    BPh = B * Ph
    inv_n = 1.0 / float(sr * sr)

    def kernel(si_ref, feat_ref, lp_ref, out_ref):
        lp = lp_ref[0]                       # (5, B*Ph) f32 per-lane ROI params
        y0l = lp[0:1, :]                     # lane l = b*Ph + ph
        bhl = lp[1:2, :]
        phl = lp[2:3, :]
        x0l = lp[3:4, :]
        bwl = lp[4:5, :]

        # ---- y weights (MXU contraction axis), all B ROIs / all ph at once; 1/sr^2 folded [R4]
        h_i = lax.broadcasted_iota(jnp.int32, (Hp, BPh), 0).astype(jnp.float32)
        ay = jnp.zeros((Hp, BPh), jnp.float32)
        for iy in range(sr):
            y = y0l + bhl * (phl + (iy + 0.5) / sr)               # (1, B*Ph)
            valid = (y >= -1.0) & (y <= fH)
            yc = jnp.clip(y, 0.0, fH - 1.0)
            ay = ay + jnp.where(valid, jnp.maximum(0.0, 1.0 - jnp.abs(yc - h_i)), 0.0)
        ayb = (ay * inv_n).astype(feat_dtype)                     # (Hp, B*Ph), bf16 MXU feed

        # ---- all Pw x-weight planes, built once per step (hoisted above chunk/ow loops) [R5] --
        w_i = lax.broadcasted_iota(jnp.int32, (Wp, BPh), 0).astype(jnp.float32)
        axw = []
        for pw in range(Pw):
            a = jnp.zeros((Wp, BPh), jnp.float32)
            for ix in range(sr):
                xq = x0l + bwl * (pw + (ix + 0.5) / sr)           # (1, B*Ph)
                validx = (xq >= -1.0) & (xq <= fW)
                xc = jnp.clip(xq, 0.0, fW - 1.0)
                a = a + jnp.where(validx, jnp.maximum(0.0, 1.0 - jnp.abs(xc - w_i)), 0.0)
            axw.append(a)

        # ---- channel-chunked stage 1 (MXU) + stage 2 (VPU mul + XLU sublane reduce) [R6] ------
        for c0 in range(0, C, c_chunk):
            fch = feat_ref[0, c0 * Wp:(c0 + c_chunk) * Wp, :]     # (cc*Wp, Hp) bf16
            t = jnp.dot(fch, ayb, preferred_element_type=jnp.float32)   # (cc*Wp, B*Ph) f32
            u = t.reshape(c_chunk, Wp, BPh)                       # free regroup: Wp % 8 == 0 [R7]
            for ow in range(Pw2):
                za = jnp.sum(u * axw[2 * ow][None, :, :], axis=1)       # (cc, B*Ph)
                zb = jnp.sum(u * axw[2 * ow + 1][None, :, :], axis=1)
                # fused pw max-pool; lane-dense (B*Ph >= 128) unmasked store [R1][R3]
                out_ref[0, ow, c0:c0 + c_chunk, :] = jnp.maximum(za, zb)

    return kernel


def roi_pooler(x_nchw, box_lists, output_size=OUTPUT_SIZE, scale=SCALE,
               sampling_ratio=SAMPLING_RATIO, rois_per_step=ROIS_PER_STEP):
    """Equivalent of ROIPooler.forward(x, box_lists) for a single feature level."""
    N, C, H, W = x_nchw.shape
    Ph = Pw = int(output_size)
    assert Ph % 2 == 0, "output_size must be even (nn.MaxPool2d(2) follows ROIAlign)"
    sr = int(sampling_ratio)
    assert sr > 0, "sampling_ratio=0 (adaptive grid) not implemented"
    Ph2, Pw2 = Ph // 2, Pw // 2
    B = int(rois_per_step)
    BPh = B * Ph

    counts = [int(b.shape[0]) for b in box_lists]
    M = sum(counts)
    if M == 0:
        return jnp.zeros((0, C, Ph2, Pw2), jnp.float32)

    # ---- [R8] contract the larger spatial axis on the MXU (swap x/y roles when W > H) --------
    swap = (W > H) and (Ph == Pw)
    if swap:
        x_feat = jnp.transpose(x_nchw, (0, 1, 3, 2))     # (N, C, W, H)
        Hy, Wx = W, H                                     # kernel y-axis = original W
    else:
        x_feat = x_nchw
        Hy, Wx = H, W

    # ---- [R7] pad spatial dims to multiples of 8 (zero rows get zero bilinear weight) --------
    Hp = _ceil_to(Hy, 8)
    Wp = _ceil_to(Wx, 8)
    if Hp != Hy or Wp != Wx:
        x_feat = jnp.pad(x_feat, ((0, 0), (0, 0), (0, Hp - Hy), (0, Wp - Wx)))

    # ---- group ROIs by image, pad each image's list to a multiple of B (static shapes) -------
    chunks, step_img, valid_idx = [], [], []
    row_off = 0
    for i, b in enumerate(box_lists):
        c = counts[i]
        if c == 0:
            continue
        steps = -(-c // B)
        bi = jnp.asarray(b, jnp.float32)
        if swap:   # swap (x0,y0,x1,y1) -> (y0,x0,y1,x1) to match the transposed feature map
            bi = jnp.stack([bi[:, 1], bi[:, 0], bi[:, 3], bi[:, 2]], axis=1)
        pad = steps * B - c
        if pad:
            bi = jnp.concatenate([bi, jnp.zeros((pad, 4), jnp.float32)], axis=0)
        chunks.append(bi)
        step_img.extend([i] * steps)
        valid_idx.extend(range(row_off, row_off + c))
        row_off += steps * B
    boxes_p = jnp.concatenate(chunks, axis=0)             # (G*B, 4), image-grouped, padded
    G = len(step_img)
    step_img = jnp.asarray(step_img, jnp.int32)            # (G,)  scalar prefetch
    valid_idx = jnp.asarray(valid_idx, jnp.int32)           # (M,)

    # ---- per-ROI params expanded to one value per (roi, ph) lane (packaging only) ------------
    x0 = boxes_p[:, 0] * scale
    y0 = boxes_p[:, 1] * scale
    x1 = boxes_p[:, 2] * scale
    y1 = boxes_p[:, 3] * scale
    bin_w = jnp.maximum(x1 - x0, 1.0) / Pw
    bin_h = jnp.maximum(y1 - y0, 1.0) / Ph

    def per_lane(v):                   # (G*B,) -> (G, B*Ph): repeat each ROI's value Ph times
        return jnp.repeat(v.reshape(G, B), Ph, axis=1)

    ph_pat = jnp.broadcast_to(jnp.tile(jnp.arange(Ph, dtype=jnp.float32), (B,)), (G, BPh))
    lane_params = jnp.stack(
        [per_lane(y0), per_lane(bin_h), ph_pat, per_lane(x0), per_lane(bin_w)], axis=1
    )                                                       # (G, 5, B*Ph)

    # ---- feature map laid out (N, C*Wp, Hp): rows = (c, w), lanes = MXU-contracted y axis ----
    feat = jnp.transpose(x_feat, (0, 1, 3, 2)).reshape(N, C * Wp, Hp).astype(FEAT_DTYPE)

    # ---- [R6] channel chunk size (keep it a multiple of 8 so sub-writes stay tile-aligned) ---
    c_chunk = C
    for d in (64, 32, 16, 8):
        if C % d == 0:
            c_chunk = d
            break

    kernel = _make_roi_pooler_kernel(C, Wp, Hp, float(Hy), float(Wx),
                                     Ph, Pw, B, sr, c_chunk, FEAT_DTYPE)

    feat_idx = lambda g, si: (si[g], 0, 0)                  # one feature block per step's image
    feat_block_bytes = C * Wp * _ceil_to(Hp, 128) * jnp.dtype(FEAT_DTYPE).itemsize
    if feat_block_bytes > (8 << 20):
        # [R2] real FPN-sized blocks: single-buffer (consecutive steps reuse the same image, so
        # the re-DMA is already skipped and the 2nd buffer only burns VMEM — critical on v7x).
        feat_spec = pl.BlockSpec((1, C * Wp, Hp), feat_idx, pipeline_mode=pl.Buffered(1))
        n_feat_bufs = 1
    else:
        feat_spec = pl.BlockSpec((1, C * Wp, Hp), feat_idx)
        n_feat_bufs = 2

    grid_spec = pltpu.PrefetchScalarGridSpec(
        num_scalar_prefetch=1,
        grid=(G,),
        in_specs=[
            feat_spec,                                               # feature of step's image
            pl.BlockSpec((1, 5, BPh), lambda g, si: (g, 0, 0)),      # per-step ROI lane params
        ],
        out_specs=pl.BlockSpec((1, Pw2, C, BPh), lambda g, si: (g, 0, 0, 0)),
    )

    # [R10] advisory cost estimate for XLA scheduling around the custom call.
    flops = int(G * (2 * C * Wp * Hp * BPh + 2 * C * Wp * BPh * Pw))
    bytes_accessed = int(G * (C * Wp * Hp * jnp.dtype(FEAT_DTYPE).itemsize
                              + 5 * BPh * 4 + Pw2 * C * BPh * 4))
    cost = pl.CostEstimate(flops=flops, transcendentals=0, bytes_accessed=bytes_accessed)

    # [R2] explicit VMEM budget (feature buffers + output double-buffer + in-kernel live set).
    lane_pad = _ceil_to(BPh, 128)
    vmem_est = (n_feat_bufs * int(feat_block_bytes)
                + 2 * Pw2 * C * lane_pad * 4
                + (Pw + 3) * Wp * lane_pad * 4
                + 3 * c_chunk * Wp * lane_pad * 4
                + (1 << 20))
    vmem_limit = int(min(max(2 * vmem_est, 32 << 20), 100 << 20))

    out = pl.pallas_call(
        kernel,
        out_shape=jax.ShapeDtypeStruct((G, Pw2, C, BPh), jnp.float32),
        grid_spec=grid_spec,
        compiler_params=pltpu.CompilerParams(
            dimension_semantics=("parallel",),
            vmem_limit_bytes=vmem_limit),
        cost_estimate=cost,
    )(step_img, feat, lane_params)

    # [R3] ph max-pool + lane compaction fused into the existing output plumbing, then
    # (G, Pw2, C, B*Ph) -> (M, C, Ph2, Pw2); un-swap the spatial axes if [R8] transposed them.
    out = out.reshape(G, Pw2, C, B, Ph2, 2).max(axis=5)
    out = jnp.transpose(out, (0, 3, 2, 4, 1)).reshape(G * B, C, Ph2, Pw2)
    out = jnp.take(out, valid_idx, axis=0)
    if swap:
        out = jnp.transpose(out, (0, 1, 3, 2))
    return out


# ---------------- pure numpy reference (ROIAlign aligned=False + MaxPool2d(2)) ----------------
def ref_roi_pooler(x, batch_idx, boxes, output_size, scale, sr):
    x = np.asarray(x, np.float32)
    boxes = np.asarray(boxes, np.float32)
    batch_idx = np.asarray(batch_idx)
    N, C, H, W = x.shape
    Ph = Pw = output_size
    M = boxes.shape[0]
    pooled = np.zeros((M, C, Ph, Pw), np.float32)

    def bilinear(fm, y, xq):
        if y < -1.0 or y > H or xq < -1.0 or xq > W:
            return np.zeros((C,), np.float32)
        y = min(max(y, 0.0), H - 1.0)
        xq = min(max(xq, 0.0), W - 1.0)
        y0 = int(np.floor(y)); x0 = int(np.floor(xq))
        y1 = min(y0 + 1, H - 1); x1 = min(x0 + 1, W - 1)
        ly, lx = y - y0, xq - x0
        hy, hx = 1.0 - ly, 1.0 - lx
        return (hy * hx * fm[:, y0, x0] + hy * lx * fm[:, y0, x1]
                + ly * hx * fm[:, y1, x0] + ly * lx * fm[:, y1, x1])

    for m in range(M):
        b = int(batch_idx[m])
        x0b, y0b, x1b, y1b = boxes[m] * scale
        roi_w = max(x1b - x0b, 1.0); roi_h = max(y1b - y0b, 1.0)
        bin_h, bin_w = roi_h / Ph, roi_w / Pw
        for ph in range(Ph):
            for pw in range(Pw):
                acc = np.zeros((C,), np.float32)
                for iy in range(sr):
                    yq = y0b + ph * bin_h + (iy + 0.5) * bin_h / sr
                    for ix in range(sr):
                        xq = x0b + pw * bin_w + (ix + 0.5) * bin_w / sr
                        acc += bilinear(x[b], yq, xq)
                pooled[m, :, ph, pw] = acc / (sr * sr)
    Ph2, Pw2 = Ph // 2, Pw // 2
    return pooled.reshape(M, C, Ph2, 2, Pw2, 2).max(axis=(3, 5))


def _run_case(key, N, C, H, W, n_boxes):
    k1, k2, k3 = jax.random.split(key, 3)
    x = jax.random.normal(k1, (N, C, H, W), dtype=jnp.float32)

    img_w, img_h = W / SCALE, H / SCALE
    m_total = sum(n_boxes)
    sizes = jnp.array([img_w, img_h], jnp.float32)
    u0 = jax.random.uniform(k2, (m_total, 2))
    uw = jax.random.uniform(k3, (m_total, 2))
    xy0 = u0 * 0.6 * sizes
    wh = 4.0 + uw * (0.4 * sizes - 4.0)
    x1y1 = jnp.minimum(xy0 + wh, sizes - 1.0)
    b_all = jnp.concatenate([xy0, x1y1], axis=1)            # (M, 4) = (x0, y0, x1, y1)

    box_lists, off = [], 0
    for n in n_boxes:
        box_lists.append(b_all[off:off + n]); off += n

    out = jax.block_until_ready(roi_pooler(x, box_lists))

    _, batch_idx, boxes = convert_boxes_to_pooler_format(box_lists)
    ref = ref_roi_pooler(np.asarray(x), batch_idx, boxes, OUTPUT_SIZE, SCALE, SAMPLING_RATIO)
    assert out.shape == (m_total, C, OUTPUT_SIZE // 2, OUTPUT_SIZE // 2)
    np.testing.assert_allclose(np.asarray(out), ref, rtol=2e-2, atol=2e-2)


if __name__ == "__main__":
    key = jax.random.PRNGKey(0)
    k_a, k_b = jax.random.split(key)
    # square feature level (stride 4 => 64x64 image): no swap, no padding path
    _run_case(k_a, N=2, C=8, H=16, W=16, n_boxes=[3, 2])
    # rectangular level with W > H: exercises the axis swap [R8] and 8-padding [R7] paths
    _run_case(k_b, N=2, C=8, H=12, W=16, n_boxes=[2, 3])
    print("KERNEL_OK")
</pallas_src>

<mosaic_0001>
module attributes {stable_mosaic.version = 11 : i64} {
  func.func @kernel(%arg0: i32, %arg1: memref<2xi32, #tpu.memory_space<smem>>, %arg2: memref<1x128x16xbf16, #tpu.memory_space<vmem>>, %arg3: memref<1x5x128xf32, #tpu.memory_space<vmem>>, %arg4: memref<1x2x8x128xf32, #tpu.memory_space<vmem>>) attributes {dimension_semantics = [#tpu.dimension_semantics<parallel>], iteration_bounds = array<i64: 2>, scalar_prefetch = 1 : i64, scratch_operands = 0 : i64, tpu.core_type = #tpu.core_type<tc>, window_params = [{transform_indices = @transform_0, window_bounds = array<i64: 1, 128, 16>}, {transform_indices = @transform_1, window_bounds = array<i64: 1, 5, 128>}, {transform_indices = @transform_2, window_bounds = array<i64: 1, 2, 8, 128>}]} {
    %c0 = arith.constant 0 : index
    %c0_0 = arith.constant 0 : index
    %c0_1 = arith.constant 0 : index
    %0 = vector.load %arg3[%c0, %c0_0, %c0_1] : memref<1x5x128xf32, #tpu.memory_space<vmem>>, vector<1x5x128xf32>
    %1 = vector.shape_cast %0 : vector<1x5x128xf32> to vector<5x128xf32>
    %2 = vector.extract_strided_slice %1 {offsets = [0, 0], sizes = [1, 128], strides = [1, 1]} : vector<5x128xf32> to vector<1x128xf32>
    %3 = vector.extract_strided_slice %1 {offsets = [1, 0], sizes = [1, 128], strides = [1, 1]} : vector<5x128xf32> to vector<1x128xf32>
    %4 = vector.extract_strided_slice %1 {offsets = [2, 0], sizes = [1, 128], strides = [1, 1]} : vector<5x128xf32> to vector<1x128xf32>
    %5 = vector.extract_strided_slice %1 {offsets = [3, 0], sizes = [1, 128], strides = [1, 1]} : vector<5x128xf32> to vector<1x128xf32>
    %6 = vector.extract_strided_slice %1 {offsets = [4, 0], sizes = [1, 128], strides = [1, 1]} : vector<5x128xf32> to vector<1x128xf32>
    %7 = tpu.iota {dimensions = array<i32: 0>} : vector<16x128xi32>
    %8 = arith.sitofp %7 : vector<16x128xi32> to vector<16x128xf32>
    %cst = arith.constant 0.000000e+00 : f32
    %9 = vector.broadcast %cst : f32 to vector<16x128xf32>
    %cst_2 = arith.constant 2.500000e-01 : f32
    %10 = vector.broadcast %cst_2 : f32 to vector<1x128xf32>
    %11 = arith.addf %4, %10 : vector<1x128xf32>
    %12 = arith.mulf %3, %11 : vector<1x128xf32>
    %13 = arith.addf %2, %12 : vector<1x128xf32>
    %cst_3 = arith.constant -1.000000e+00 : f32
    %14 = vector.broadcast %cst_3 : f32 to vector<1x128xf32>
    %15 = arith.cmpf oge, %13, %14 : vector<1x128xf32>
    %cst_4 = arith.constant 1.600000e+01 : f32
    %16 = vector.broadcast %cst_4 : f32 to vector<1x128xf32>
    %17 = arith.cmpf ole, %13, %16 : vector<1x128xf32>
    %18 = arith.andi %15, %17 : vector<1x128xi1>
    %cst_5 = arith.constant 0.000000e+00 : f32
    %cst_6 = arith.constant 1.500000e+01 : f32
    %19 = vector.broadcast %cst_5 : f32 to vector<1x128xf32>
    %20 = arith.maximumf %19, %13 : vector<1x128xf32>
    %21 = vector.broadcast %cst_6 : f32 to vector<1x128xf32>
    %22 = arith.minimumf %21, %20 : vector<1x128xf32>
    %23 = vector.broadcast %22 : vector<1x128xf32> to vector<16x128xf32>
    %24 = arith.subf %23, %8 : vector<16x128xf32>
    %25 = math.absf %24 : vector<16x128xf32>
    %cst_7 = arith.constant 1.000000e+00 : f32
    %26 = vector.broadcast %cst_7 : f32 to vector<16x128xf32>
    %27 = arith.subf %26, %25 : vector<16x128xf32>
    %cst_8 = arith.constant 0.000000e+00 : f32
    %28 = vector.broadcast %cst_8 : f32 to vector<16x128xf32>
    %29 = arith.maximumf %28, %27 : vector<16x128xf32>
    %cst_9 = arith.constant 0.000000e+00 : f32
    %30 = vector.shape_cast %18 : vector<1x128xi1> to vector<1x128xi1>
    %31 = vector.broadcast %30 : vector<1x128xi1> to vector<16x128xi1>
    %32 = vector.broadcast %cst_9 : f32 to vector<16x128xf32>
    %33 = arith.select %31, %29, %32 : vector<16x128xi1>, vector<16x128xf32>
    %34 = arith.addf %9, %33 : vector<16x128xf32>
    %cst_10 = arith.constant 7.500000e-01 : f32
    %35 = vector.broadcast %cst_10 : f32 to vector<1x128xf32>
    %36 = arith.addf %4, %35 : vector<1x128xf32>
    %37 = arith.mulf %3, %36 : vector<1x128xf32>
    %38 = arith.addf %2, %37 : vector<1x128xf32>
    %cst_11 = arith.constant -1.000000e+00 : f32
    %39 = vector.broadcast %cst_11 : f32 to vector<1x128xf32>
    %40 = arith.cmpf oge, %38, %39 : vector<1x128xf32>
    %cst_12 = arith.constant 1.600000e+01 : f32
    %41 = vector.broadcast %cst_12 : f32 to vector<1x128xf32>
    %42 = arith.cmpf ole, %38, %41 : vector<1x128xf32>
    %43 = arith.andi %40, %42 : vector<1x128xi1>
    %cst_13 = arith.constant 0.000000e+00 : f32
    %cst_14 = arith.constant 1.500000e+01 : f32
    %44 = vector.broadcast %cst_13 : f32 to vector<1x128xf32>
    %45 = arith.maximumf %44, %38 : vector<1x128xf32>
    %46 = vector.broadcast %cst_14 : f32 to vector<1x128xf32>
    %47 = arith.minimumf %46, %45 : vector<1x128xf32>
    %48 = vector.broadcast %47 : vector<1x128xf32> to vector<16x128xf32>
    %49 = arith.subf %48, %8 : vector<16x128xf32>
    %50 = math.absf %49 : vector<16x128xf32>
    %cst_15 = arith.constant 1.000000e+00 : f32
    %51 = vector.broadcast %cst_15 : f32 to vector<16x128xf32>
    %52 = arith.subf %51, %50 : vector<16x128xf32>
    %cst_16 = arith.constant 0.000000e+00 : f32
    %53 = vector.broadcast %cst_16 : f32 to vector<16x128xf32>
    %54 = arith.maximumf %53, %52 : vector<16x128xf32>
    %cst_17 = arith.constant 0.000000e+00 : f32
    %55 = vector.shape_cast %43 : vector<1x128xi1> to vector<1x128xi1>
    %56 = vector.broadcast %55 : vector<1x128xi1> to vector<16x128xi1>
    %57 = vector.broadcast %cst_17 : f32 to vector<16x128xf32>
    %58 = arith.select %56, %54, %57 : vector<16x128xi1>, vector<16x128xf32>
    %59 = arith.addf %34, %58 : vector<16x128xf32>
    %cst_18 = arith.constant 2.500000e-01 : f32
    %60 = vector.broadcast %cst_18 : f32 to vector<16x128xf32>
    %61 = arith.mulf %59, %60 : vector<16x128xf32>
    %62 = arith.truncf %61 : vector<16x128xf32> to vector<16x128xbf16>
    %63 = tpu.iota {dimensions = array<i32: 0>} : vector<16x128xi32>
    %64 = arith.sitofp %63 : vector<16x128xi32> to vector<16x128xf32>
    %cst_19 = arith.constant 0.000000e+00 : f32
    %65 = vector.broadcast %cst_19 : f32 to vector<16x128xf32>
    %cst_20 = arith.constant 2.500000e-01 : f32
    %66 = vector.broadcast %cst_20 : f32 to vector<1x128xf32>
    %67 = arith.mulf %6, %66 : vector<1x128xf32>
    %68 = arith.addf %5, %67 : vector<1x128xf32>
    %cst_21 = arith.constant -1.000000e+00 : f32
    %69 = vector.broadcast %cst_21 : f32 to vector<1x128xf32>
    %70 = arith.cmpf oge, %68, %69 : vector<1x128xf32>
    %cst_22 = arith.constant 1.600000e+01 : f32
    %71 = vector.broadcast %cst_22 : f32 to vector<1x128xf32>
    %72 = arith.cmpf ole, %68, %71 : vector<1x128xf32>
    %73 = arith.andi %70, %72 : vector<1x128xi1>
    %cst_23 = arith.constant 0.000000e+00 : f32
    %cst_24 = arith.constant 1.500000e+01 : f32
    %74 = vector.broadcast %cst_23 : f32 to vector<1x128xf32>
    %75 = arith.maximumf %74, %68 : vector<1x128xf32>
    %76 = vector.broadcast %cst_24 : f32 to vector<1x128xf32>
    %77 = arith.minimumf %76, %75 : vector<1x128xf32>
    %78 = vector.broadcast %77 : vector<1x128xf32> to vector<16x128xf32>
    %79 = arith.subf %78, %64 : vector<16x128xf32>
    %80 = math.absf %79 : vector<16x128xf32>
    %cst_25 = arith.constant 1.000000e+00 : f32
    %81 = vector.broadcast %cst_25 : f32 to vector<16x128xf32>
    %82 = arith.subf %81, %80 : vector<16x128xf32>
    %cst_26 = arith.constant 0.000000e+00 : f32
    %83 = vector.broadcast %cst_26 : f32 to vector<16x128xf32>
    %84 = arith.maximumf %83, %82 : vector<16x128xf32>
    %cst_27 = arith.constant 0.000000e+00 : f32
    %85 = vector.shape_cast %73 : vector<1x128xi1> to vector<1x128xi1>
    %86 = vector.broadcast %85 : vector<1x128xi1> to vector<16x128xi1>
    %87 = vector.broadcast %cst_27 : f32 to vector<16x128xf32>
    %88 = arith.select %86, %84, %87 : vector<16x128xi1>, vector<16x128xf32>
    %89 = arith.addf %65, %88 : vector<16x128xf32>
    %cst_28 = arith.constant 7.500000e-01 : f32
    %90 = vector.broadcast %cst_28 : f32 to vector<1x128xf32>
    %91 = arith.mulf %6, %90 : vector<1x128xf32>
    %92 = arith.addf %5, %91 : vector<1x128xf32>
    %cst_29 = arith.constant -1.000000e+00 : f32
    %93 = vector.broadcast %cst_29 : f32 to vector<1x128xf32>
    %94 = arith.cmpf oge, %92, %93 : vector<1x128xf32>
    %cst_30 = arith.constant 1.600000e+01 : f32
    %95 = vector.broadcast %cst_30 : f32 to vector<1x128xf32>
    %96 = arith.cmpf ole, %92, %95 : vector<1x128xf32>
    %97 = arith.andi %94, %96 : vector<1x128xi1>
    %cst_31 = arith.constant 0.000000e+00 : f32
    %cst_32 = arith.constant 1.500000e+01 : f32
    %98 = vector.broadcast %cst_31 : f32 to vector<1x128xf32>
    %99 = arith.maximumf %98, %92 : vector<1x128xf32>
    %100 = vector.broadcast %cst_32 : f32 to vector<1x128xf32>
    %101 = arith.minimumf %100, %99 : vector<1x128xf32>
    %102 = vector.broadcast %101 : vector<1x128xf32> to vector<16x128xf32>
    %103 = arith.subf %102, %64 : vector<16x128xf32>
    %104 = math.absf %103 : vector<16x128xf32>
    %cst_33 = arith.constant 1.000000e+00 : f32
    %105 = vector.broadcast %cst_33 : f32 to vector<16x128xf32>
    %106 = arith.subf %105, %104 : vector<16x128xf32>
    %cst_34 = arith.constant 0.000000e+00 : f32
    %107 = vector.broadcast %cst_34 : f32 to vector<16x128xf32>
    %108 = arith.maximumf %107, %106 : vector<16x128xf32>
    %cst_35 = arith.constant 0.000000e+00 : f32
    %109 = vector.shape_cast %97 : vector<1x128xi1> to vector<1x128xi1>
    %110 = vector.broadcast %109 : vector<1x128xi1> to vector<16x128xi1>
    %111 = vector.broadcast %cst_35 : f32 to vector<16x128xf32>
    %112 = arith.select %110, %108, %111 : vector<16x128xi1>, vector<16x128xf32>
    %113 = arith.addf %89, %112 : vector<16x128xf32>
    %cst_36 = arith.constant 0.000000e+00 : f32
    %114 = vector.broadcast %cst_36 : f32 to vector<16x128xf32>
    %cst_37 = arith.constant 1.250000e+00 : f32
    %115 = vector.broadcast %cst_37 : f32 to vector<1x128xf32>
    %116 = arith.mulf %6, %115 : vector<1x128xf32>
    %117 = arith.addf %5, %116 : vector<1x128xf32>
    %cst_38 = arith.constant -1.000000e+00 : f32
    %118 = vector.broadcast %cst_38 : f32 to vector<1x128xf32>
    %119 = arith.cmpf oge, %117, %118 : vector<1x128xf32>
    %cst_39 = arith.constant 1.600000e+01 : f32
    %120 = vector.broadcast %cst_39 : f32 to vector<1x128xf32>
    %121 = arith.cmpf ole, %117, %120 : vector<1x128xf32>
    %122 = arith.andi %119, %121 : vector<1x128xi1>
    %cst_40 = arith.constant 0.000000e+00 : f32
    %cst_41 = arith.constant 1.500000e+01 : f32
    %123 = vector.broadcast %cst_40 : f32 to vector<1x128xf32>
    %124 = arith.maximumf %123, %117 : vector<1x128xf32>
    %125 = vector.broadcast %cst_41 : f32 to vector<1x128xf32>
    %126 = arith.minimumf %125, %124 : vector<1x128xf32>
    %127 = vector.broadcast %126 : vector<1x128xf32> to vector<16x128xf32>
    %128 = arith.subf %127, %64 : vector<16x128xf32>
    %129 = math.absf %128 : vector<16x128xf32>
    %cst_42 = arith.constant 1.000000e+00 : f32
    %130 = vector.broadcast %cst_42 : f32 to vector<16x128xf32>
    %131 = arith.subf %130, %129 : vector<16x128xf32>
    %cst_43 = arith.constant 0.000000e+00 : f32
    %132 = vector.broadcast %cst_43 : f32 to vector<16x128xf32>
    %133 = arith.maximumf %132, %131 : vector<16x128xf32>
    %cst_44 = arith.constant 0.000000e+00 : f32
    %134 = vector.shape_cast %122 : vector<1x128xi1> to vector<1x128xi1>
    %135 = vector.broadcast %134 : vector<1x128xi1> to vector<16x128xi1>
    %136 = vector.broadcast %cst_44 : f32 to vector<16x128xf32>
    %137 = arith.select %135, %133, %136 : vector<16x128xi1>, vector<16x128xf32>
    %138 = arith.addf %114, %137 : vector<16x128xf32>
    %cst_45 = arith.constant 1.750000e+00 : f32
    %139 = vector.broadcast %cst_45 : f32 to vector<1x128xf32>
    %140 = arith.mulf %6, %139 : vector<1x128xf32>
    %141 = arith.addf %5, %140 : vector<1x128xf32>
    %cst_46 = arith.constant -1.000000e+00 : f32
    %142 = vector.broadcast %cst_46 : f32 to vector<1x128xf32>
    %143 = arith.cmpf oge, %141, %142 : vector<1x128xf32>
    %cst_47 = arith.constant 1.600000e+01 : f32
    %144 = vector.broadcast %cst_47 : f32 to vector<1x128xf32>
    %145 = arith.cmpf ole, %141, %144 : vector<1x128xf32>
    %146 = arith.andi %143, %145 : vector<1x128xi1>
    %cst_48 = arith.constant 0.000000e+00 : f32
    %cst_49 = arith.constant 1.500000e+01 : f32
    %147 = vector.broadcast %cst_48 : f32 to vector<1x128xf32>
    %148 = arith.maximumf %147, %141 : vector<1x128xf32>
    %149 = vector.broadcast %cst_49 : f32 to vector<1x128xf32>
    %150 = arith.minimumf %149, %148 : vector<1x128xf32>
    %151 = vector.broadcast %150 : vector<1x128xf32> to vector<16x128xf32>
    %152 = arith.subf %151, %64 : vector<16x128xf32>
    %153 = math.absf %152 : vector<16x128xf32>
    %cst_50 = arith.constant 1.000000e+00 : f32
    %154 = vector.broadcast %cst_50 : f32 to vector<16x128xf32>
    %155 = arith.subf %154, %153 : vector<16x128xf32>
    %cst_51 = arith.constant 0.000000e+00 : f32
    %156 = vector.broadcast %cst_51 : f32 to vector<16x128xf32>
    %157 = arith.maximumf %156, %155 : vector<16x128xf32>
    %cst_52 = arith.constant 0.000000e+00 : f32
    %158 = vector.shape_cast %146 : vector<1x128xi1> to vector<1x128xi1>
    %159 = vector.broadcast %158 : vector<1x128xi1> to vector<16x128xi1>
    %160 = vector.broadcast %cst_52 : f32 to vector<16x128xf32>
    %161 = arith.select %159, %157, %160 : vector<16x128xi1>, vector<16x128xf32>
    %162 = arith.addf %138, %161 : vector<16x128xf32>
    %cst_53 = arith.constant 0.000000e+00 : f32
    %163 = vector.broadcast %cst_53 : f32 to vector<16x128xf32>
    %cst_54 = arith.constant 2.250000e+00 : f32
    %164 = vector.broadcast %cst_54 : f32 to vector<1x128xf32>
    %165 = arith.mulf %6, %164 : vector<1x128xf32>
    %166 = arith.addf %5, %165 : vector<1x128xf32>
    %cst_55 = arith.constant -1.000000e+00 : f32
    %167 = vector.broadcast %cst_55 : f32 to vector<1x128xf32>
    %168 = arith.cmpf oge, %166, %167 : vector<1x128xf32>
    %cst_56 = arith.constant 1.600000e+01 : f32
    %169 = vector.broadcast %cst_56 : f32 to vector<1x128xf32>
    %170 = arith.cmpf ole, %166, %169 : vector<1x128xf32>
    %171 = arith.andi %168, %170 : vector<1x128xi1>
    %cst_57 = arith.constant 0.000000e+00 : f32
    %cst_58 = arith.constant 1.500000e+01 : f32
    %172 = vector.broadcast %cst_57 : f32 to vector<1x128xf32>
    %173 = arith.maximumf %172, %166 : vector<1x128xf32>
    %174 = vector.broadcast %cst_58 : f32 to vector<1x128xf32>
    %175 = arith.minimumf %174, %173 : vector<1x128xf32>
    %176 = vector.broadcast %175 : vector<1x128xf32> to vector<16x128xf32>
    %177 = arith.subf %176, %64 : vector<16x128xf32>
    %178 = math.absf %177 : vector<16x128xf32>
    %cst_59 = arith.constant 1.000000e+00 : f32
    %179 = vector.broadcast %cst_59 : f32 to vector<16x128xf32>
    %180 = arith.subf %179, %178 : vector<16x128xf32>
    %cst_60 = arith.constant 0.000000e+00 : f32
    %181 = vector.broadcast %cst_60 : f32 to vector<16x128xf32>
    %182 = arith.maximumf %181, %180 : vector<16x128xf32>
    %cst_61 = arith.constant 0.000000e+00 : f32
    %183 = vector.shape_cast %171 : vector<1x128xi1> to vector<1x128xi1>
    %184 = vector.broadcast %183 : vector<1x128xi1> to vector<16x128xi1>
    %185 = vector.broadcast %cst_61 : f32 to vector<16x128xf32>
    %186 = arith.select %184, %182, %185 : vector<16x128xi1>, vector<16x128xf32>
    %187 = arith.addf %163, %186 : vector<16x128xf32>
    %cst_62 = arith.constant 2.750000e+00 : f32
    %188 = vector.broadcast %cst_62 : f32 to vector<1x128xf32>
    %189 = arith.mulf %6, %188 : vector<1x128xf32>
    %190 = arith.addf %5, %189 : vector<1x128xf32>
    %cst_63 = arith.constant -1.000000e+00 : f32
    %191 = vector.broadcast %cst_63 : f32 to vector<1x128xf32>
    %192 = arith.cmpf oge, %190, %191 : vector<1x128xf32>
    %cst_64 = arith.constant 1.600000e+01 : f32
    %193 = vector.broadcast %cst_64 : f32 to vector<1x128xf32>
    %194 = arith.cmpf ole, %190, %193 : vector<1x128xf32>
    %195 = arith.andi %192, %194 : vector<1x128xi1>
    %cst_65 = arith.constant 0.000000e+00 : f32
    %cst_66 = arith.constant 1.500000e+01 : f32
    %196 = vector.broadcast %cst_65 : f32 to vector<1x128xf32>
    %197 = arith.maximumf %196, %190 : vector<1x128xf32>
    %198 = vector.broadcast %cst_66 : f32 to vector<1x128xf32>
    %199 = arith.minimumf %198, %197 : vector<1x128xf32>
    %200 = vector.broadcast %199 : vector<1x128xf32> to vector<16x128xf32>
    %201 = arith.subf %200, %64 : vector<16x128xf32>
    %202 = math.absf %201 : vector<16x128xf32>
    %cst_67 = arith.constant 1.000000e+00 : f32
    %203 = vector.broadcast %cst_67 : f32 to vector<16x128xf32>
    %204 = arith.subf %203, %202 : vector<16x128xf32>
    %cst_68 = arith.constant 0.000000e+00 : f32
    %205 = vector.broadcast %cst_68 : f32 to vector<16x128xf32>
    %206 = arith.maximumf %205, %204 : vector<16x128xf32>
    %cst_69 = arith.constant 0.000000e+00 : f32
    %207 = vector.shape_cast %195 : vector<1x128xi1> to vector<1x128xi1>
    %208 = vector.broadcast %207 : vector<1x128xi1> to vector<16x128xi1>
    %209 = vector.broadcast %cst_69 : f32 to vector<16x128xf32>
    %210 = arith.select %208, %206, %209 : vector<16x128xi1>, vector<16x128xf32>
    %211 = arith.addf %187, %210 : vector<16x128xf32>
    %cst_70 = arith.constant 0.000000e+00 : f32
    %212 = vector.broadcast %cst_70 : f32 to vector<16x128xf32>
    %cst_71 = arith.constant 3.250000e+00 : f32
    %213 = vector.broadcast %cst_71 : f32 to vector<1x128xf32>
    %214 = arith.mulf %6, %213 : vector<1x128xf32>
    %215 = arith.addf %5, %214 : vector<1x128xf32>
    %cst_72 = arith.constant -1.000000e+00 : f32
    %216 = vector.broadcast %cst_72 : f32 to vector<1x128xf32>
    %217 = arith.cmpf oge, %215, %216 : vector<1x128xf32>
    %cst_73 = arith.constant 1.600000e+01 : f32
    %218 = vector.broadcast %cst_73 : f32 to vector<1x128xf32>
    %219 = arith.cmpf ole, %215, %218 : vector<1x128xf32>
    %220 = arith.andi %217, %219 : vector<1x128xi1>
    %cst_74 = arith.constant 0.000000e+00 : f32
    %cst_75 = arith.constant 1.500000e+01 : f32
    %221 = vector.broadcast %cst_74 : f32 to vector<1x128xf32>
    %222 = arith.maximumf %221, %215 : vector<1x128xf32>
    %223 = vector.broadcast %cst_75 : f32 to vector<1x128xf32>
    %224 = arith.minimumf %223, %222 : vector<1x128xf32>
    %225 = vector.broadcast %224 : vector<1x128xf32> to vector<16x128xf32>
    %226 = arith.subf %225, %64 : vector<16x128xf32>
    %227 = math.absf %226 : vector<16x128xf32>
    %cst_76 = arith.constant 1.000000e+00 : f32
    %228 = vector.broadcast %cst_76 : f32 to vector<16x128xf32>
    %229 = arith.subf %228, %227 : vector<16x128xf32>
    %cst_77 = arith.constant 0.000000e+00 : f32
    %230 = vector.broadcast %cst_77 : f32 to vector<16x128xf32>
    %231 = arith.maximumf %230, %229 : vector<16x128xf32>
    %cst_78 = arith.constant 0.000000e+00 : f32
    %232 = vector.shape_cast %220 : vector<1x128xi1> to vector<1x128xi1>
    %233 = vector.broadcast %232 : vector<1x128xi1> to vector<16x128xi1>
    %234 = vector.broadcast %cst_78 : f32 to vector<16x128xf32>
    %235 = arith.select %233, %231, %234 : vector<16x128xi1>, vector<16x128xf32>
    %236 = arith.addf %212, %235 : vector<16x128xf32>
    %cst_79 = arith.constant 3.750000e+00 : f32
    %237 = vector.broadcast %cst_79 : f32 to vector<1x128xf32>
    %238 = arith.mulf %6, %237 : vector<1x128xf32>
    %239 = arith.addf %5, %238 : vector<1x128xf32>
    %cst_80 = arith.constant -1.000000e+00 : f32
    %240 = vector.broadcast %cst_80 : f32 to vector<1x128xf32>
    %241 = arith.cmpf oge, %239, %240 : vector<1x128xf32>
    %cst_81 = arith.constant 1.600000e+01 : f32
    %242 = vector.broadcast %cst_81 : f32 to vector<1x128xf32>
    %243 = arith.cmpf ole, %239, %242 : vector<1x128xf32>
    %244 = arith.andi %241, %243 : vector<1x128xi1>
    %cst_82 = arith.constant 0.000000e+00 : f32
    %cst_83 = arith.constant 1.500000e+01 : f32
    %245 = vector.broadcast %cst_82 : f32 to vector<1x128xf32>
    %246 = arith.maximumf %245, %239 : vector<1x128xf32>
    %247 = vector.broadcast %cst_83 : f32 to vector<1x128xf32>
    %248 = arith.minimumf %247, %246 : vector<1x128xf32>
    %249 = vector.broadcast %248 : vector<1x128xf32> to vector<16x128xf32>
    %250 = arith.subf %249, %64 : vector<16x128xf32>
    %251 = math.absf %250 : vector<16x128xf32>
    %cst_84 = arith.constant 1.000000e+00 : f32
    %252 = vector.broadcast %cst_84 : f32 to vector<16x128xf32>
    %253 = arith.subf %252, %251 : vector<16x128xf32>
    %cst_85 = arith.constant 0.000000e+00 : f32
    %254 = vector.broadcast %cst_85 : f32 to vector<16x128xf32>
    %255 = arith.maximumf %254, %253 : vector<16x128xf32>
    %cst_86 = arith.constant 0.000000e+00 : f32
    %256 = vector.shape_cast %244 : vector<1x128xi1> to vector<1x128xi1>
    %257 = vector.broadcast %256 : vector<1x128xi1> to vector<16x128xi1>
    %258 = vector.broadcast %cst_86 : f32 to vector<16x128xf32>
    %259 = arith.select %257, %255, %258 : vector<16x128xi1>, vector<16x128xf32>
    %260 = arith.addf %236, %259 : vector<16x128xf32>
    %c0_87 = arith.constant 0 : index
    %c0_88 = arith.constant 0 : index
    %c0_89 = arith.constant 0 : index
    %261 = vector.load %arg2[%c0_87, %c0_88, %c0_89] : memref<1x128x16xbf16, #tpu.memory_space<vmem>>, vector<1x128x16xbf16>
    %262 = vector.shape_cast %261 : vector<1x128x16xbf16> to vector<128x16xbf16>
    %cst_90 = arith.constant dense<0.000000e+00> : vector<128x128xf32>
    %263 = tpu.matmul %262, %62, %cst_90 {dimension_numbers = #tpu.dot_dimension_numbers<[1], [0], [0], [1], [0, 0, 1, 1], [], []>} : vector<128x16xbf16>, vector<16x128xbf16>, vector<128x128xf32> -> vector<128x128xf32>
    %264 = vector.shape_cast %263 : vector<128x128xf32> to vector<8x16x128xf32>
    %265 = vector.shape_cast %113 : vector<16x128xf32> to vector<1x16x128xf32>
    %266 = vector.broadcast %265 : vector<1x16x128xf32> to vector<8x16x128xf32>
    %267 = arith.mulf %264, %266 : vector<8x16x128xf32>
    %cst_91 = arith.constant dense<0.000000e+00> : vector<8x128xf32>
    %268 = vector.multi_reduction <add>, %267, %cst_91 [1] : vector<8x16x128xf32> to vector<8x128xf32>
    %269 = vector.shape_cast %162 : vector<16x128xf32> to vector<1x16x128xf32>
    %270 = vector.broadcast %269 : vector<1x16x128xf32> to vector<8x16x128xf32>
    %271 = arith.mulf %264, %270 : vector<8x16x128xf32>
    %cst_92 = arith.constant dense<0.000000e+00> : vector<8x128xf32>
    %272 = vector.multi_reduction <add>, %271, %cst_92 [1] : vector<8x16x128xf32> to vector<8x128xf32>
    %273 = arith.maximumf %268, %272 : vector<8x128xf32>
    %c0_93 = arith.constant 0 : index
    %c0_94 = arith.constant 0 : index
    %c0_95 = arith.constant 0 : index
    %c0_96 = arith.constant 0 : index
    %274 = vector.load %arg4[%c0_93, %c0_94, %c0_95, %c0_96] : memref<1x2x8x128xf32, #tpu.memory_space<vmem>>, vector<1x1x8x128xf32>
    %275 = vector.shape_cast %274 : vector<1x1x8x128xf32> to vector<8x128xf32>
    %276 = vector.shape_cast %273 : vector<8x128xf32> to vector<1x1x8x128xf32>
    tpu.vector_store %arg4[%c0_93, %c0_94, %c0_95, %c0_96], %276 {strides = array<i32>} : memref<1x2x8x128xf32, #tpu.memory_space<vmem>>, vector<1x1x8x128xf32>,
    %277 = vector.shape_cast %211 : vector<16x128xf32> to vector<1x16x128xf32>
    %278 = vector.broadcast %277 : vector<1x16x128xf32> to vector<8x16x128xf32>
    %279 = arith.mulf %264, %278 : vector<8x16x128xf32>
    %cst_97 = arith.constant dense<0.000000e+00> : vector<8x128xf32>
    %280 = vector.multi_reduction <add>, %279, %cst_97 [1] : vector<8x16x128xf32> to vector<8x128xf32>
    %281 = vector.shape_cast %260 : vector<16x128xf32> to vector<1x16x128xf32>
    %282 = vector.broadcast %281 : vector<1x16x128xf32> to vector<8x16x128xf32>
    %283 = arith.mulf %264, %282 : vector<8x16x128xf32>
    %cst_98 = arith.constant dense<0.000000e+00> : vector<8x128xf32>
    %284 = vector.multi_reduction <add>, %283, %cst_98 [1] : vector<8x16x128xf32> to vector<8x128xf32>
    %285 = arith.maximumf %280, %284 : vector<8x128xf32>
    %c0_99 = arith.constant 0 : index
    %c1 = arith.constant 1 : index
    %c0_100 = arith.constant 0 : index
    %c0_101 = arith.constant 0 : index
    %286 = vector.load %arg4[%c0_99, %c1, %c0_100, %c0_101] : memref<1x2x8x128xf32, #tpu.memory_space<vmem>>, vector<1x1x8x128xf32>
    %287 = vector.shape_cast %286 : vector<1x1x8x128xf32> to vector<8x128xf32>
    %288 = vector.shape_cast %285 : vector<8x128xf32> to vector<1x1x8x128xf32>
    tpu.vector_store %arg4[%c0_99, %c1, %c0_100, %c0_101], %288 {strides = array<i32>} : memref<1x2x8x128xf32, #tpu.memory_space<vmem>>, vector<1x1x8x128xf32>,
    return
  }
  func.func @transform_0(%arg0: i32, %arg1: memref<2xi32, #tpu.memory_space<smem>>) -> (i32, i32, i32) {
    %0 = arith.index_cast %arg0 : i32 to index
    %1 = memref.load %arg1[%0] : memref<2xi32, #tpu.memory_space<smem>>
    %c0_i32 = arith.constant 0 : i32
    %c0_i32_0 = arith.constant 0 : i32
    %c0_i32_1 = arith.constant 0 : i32
    return %1, %c0_i32, %c0_i32_0 : i32, i32, i32
  }
  func.func @transform_1(%arg0: i32, %arg1: memref<2xi32, #tpu.memory_space<smem>>) -> (i32, i32, i32) {
    %c0_i32 = arith.constant 0 : i32
    %c0_i32_0 = arith.constant 0 : i32
    %c0_i32_1 = arith.constant 0 : i32
    return %arg0, %c0_i32, %c0_i32_0 : i32, i32, i32
  }
  func.func @transform_2(%arg0: i32, %arg1: memref<2xi32, #tpu.memory_space<smem>>) -> (i32, i32, i32, i32) {
    %c0_i32 = arith.constant 0 : i32
    %c0_i32_0 = arith.constant 0 : i32
    %c0_i32_1 = arith.constant 0 : i32
    %c0_i32_2 = arith.constant 0 : i32
    return %arg0, %c0_i32, %c0_i32_0, %c0_i32_1 : i32, i32, i32, i32
  }
}

</mosaic_0001>

<llo_original>
// kernel: tpu_custom_call.1
$region0: #{tpu_custom_call.1}
  #allocation0 [shape = 'u32[]', space=smem, size = 0x4, offset = 0x4, fixed_abs, tag = 'smem constant byte address 0x4 - core index']
  #allocation1 [shape = 'u32[144,128]{1,0:T(1,128)}', space=vmem, size = 0x12000, scoped, tag = 'internal scratch']
  #allocation2 [shape = 's32[1]{0}', space=sflag, size = 0x4, scoped, tag = 'scoped memory for tpu_custom_call.1']
  #allocation3 [shape = 'u8[512]{0}', space=smem, size = 0x200, scoped, tag = 'prefetched SMEM operand 0']
  %s0 = inlined_call_operand.vmem [shape: s32[2], index: 0, kind: input, shape index: {}]
  %s1 = inlined_call_operand.vmem [shape: bf16[2,128,16], index: 1, kind: input, shape index: {}]
  %s2 = inlined_call_operand.vmem [shape: f32[2,5,128], index: 2, kind: input, shape index: {}]
  %s3 = inlined_call_operand.hbm [shape: f32[2,2,8,128], index: 3, kind: output, shape index: {}]
  %s4 = sld [smem:[#allocation0]]
  $region41: #{tpu_custom_call.1} parent=0
    _
  %s6 = ssub.s32 1, %s4
  %s7 = scalar_select 0, %s6, %s4
  %s8 = sshll.u32 %s0, 4
  %s9 = int_to_ptr.vmem [resolvable:$true] %s8
  %11 = dma.vmem_to_smem %s9, 16, [#allocation3], [#allocation2]
  %12 = dma.done [#allocation2], 16
  %13 = sfence
  $region1: #{tpu_custom_call.1} parent=0
    #allocation4 [shape = 'u8[16384]{0}', space=vmem, size = 0x4000, scoped, tag = 'output window, operand 0']
    #allocation5 [shape = 's32[2]{0}', space=sflag, size = 0x8, scoped, tag = 'scoped memory for tpu_custom_call.1']
    %14 = vsyncpa [#allocation5], 0
    %s15 = scalar_lea.sflag [#allocation5], 1
    %16 = vsyncpa %s15, 0
    loop: start=0, step=1, limit=4
    $region2: #{tpu_custom_call.1} parent=1 // loop_pre_header
      _
    $region3: #{tpu_custom_call.1} parent=1 // loop_header
      %s18 = sphi 0, %s22
      %p19 = scmp.ge.s32.totalorder %s18, 4
      %s30 = sphi 0, %s32
      %s33 = sphi 0, %s30
      %s34 = sphi 0, %s33
      %s50 = sphi 0, %s34
      %s56 = sphi 0, %s58
      %s59 = sphi 0, %s56
      %s60 = sphi 0, %s59
      %s76 = sphi 0, %s60
      %s82 = sphi 0, %s84
      %s85 = sphi 0, %s82
      %s86 = sphi 0, %s85
      %s102 = sphi 0, %s86
    $region4: #{tpu_custom_call.1} parent=1 // loop_header_branch
      %21 = sbr.rel (%p19) target = $region8
    $region5: #{tpu_custom_call.1} parent=1 // loop_body
      %s23 = ssub.s32 %s18, 1
      %s24 = ssub.s32 %s18, 2
      %s25 = sadd.s32 %s18, 1
      %s26 = sld [smem:[#allocation3 + %s18]]
      %s27 = sld [smem:[#allocation3 + %s25]]
      %s28 = ssub.s32 %s26, %s27
      %p29 = scmp.eq.s32.totalorder %s28, 0
      %s31 = sadd.s32 %s30, 1
      %s32 = scalar_select %p29, %s30, %s31
      %p35 = pneg %p29
      %p36 = scmp.eq.s32.totalorder %s18, 1
      %p37 = por %p35, %p36
      %p38 = scmp.ne.s32.totalorder %s30, %s33
      %p39 = scmp.eq.s32.totalorder %s18, 0
      %p40 = por %p38, %p39
      %p41 = scmp.ne.s32.totalorder %s30, %s33
      %p42 = scmp.eq.s32.totalorder %s23, 1
      %p43 = por %p41, %p42
      %p44 = scmp.ne.s32.totalorder %s33, %s34
      %p45 = scmp.eq.s32.totalorder %s23, 0
      %p46 = por %p44, %p45
      %p47 = scmp.ne.s32.totalorder %s33, %s34
      %p48 = scmp.eq.s32.totalorder %s24, 1
      %p49 = por %p47, %p48
      %p51 = scmp.ne.s32.totalorder %s34, %s50
      %p52 = scmp.eq.s32.totalorder %s24, 0
      %p53 = por %p51, %p52
      %s54 = ssub.s32 %s18, %s25
      %p55 = scmp.eq.s32.totalorder %s54, 0
      %s57 = sadd.s32 %s56, 1
      %s58 = scalar_select %p55, %s56, %s57
      %p61 = pneg %p55
      %p62 = scmp.eq.s32.totalorder %s18, 1
      %p63 = por %p61, %p62
      %p64 = scmp.ne.s32.totalorder %s56, %s59
      %p65 = scmp.eq.s32.totalorder %s18, 0
      %p66 = por %p64, %p65
      %p67 = scmp.ne.s32.totalorder %s56, %s59
      %p68 = scmp.eq.s32.totalorder %s23, 1
      %p69 = por %p67, %p68
      %p70 = scmp.ne.s32.totalorder %s59, %s60
      %p71 = scmp.eq.s32.totalorder %s23, 0
      %p72 = por %p70, %p71
      %p73 = scmp.ne.s32.totalorder %s59, %s60
      %p74 = scmp.eq.s32.totalorder %s24, 1
      %p75 = por %p73, %p74
      %p77 = scmp.ne.s32.totalorder %s60, %s76
      %p78 = scmp.eq.s32.totalorder %s24, 0
      %p79 = por %p77, %p78
      %s80 = ssub.s32 %s18, %s25
      %p81 = scmp.eq.s32.totalorder %s80, 0
      %s83 = sadd.s32 %s82, 1
      %s84 = scalar_select %p81, %s82, %s83
      %p87 = pneg %p81
      %p88 = scmp.eq.s32.totalorder %s18, 1
      %p89 = por %p87, %p88
      %p90 = scmp.ne.s32.totalorder %s82, %s85
      %p91 = scmp.eq.s32.totalorder %s18, 0
      %p92 = por %p90, %p91
      %p93 = scmp.ne.s32.totalorder %s82, %s85
      %p94 = scmp.eq.s32.totalorder %s23, 1
      %p95 = por %p93, %p94
      %p96 = scmp.ne.s32.totalorder %s85, %s86
      %p97 = scmp.eq.s32.totalorder %s23, 0
      %p98 = por %p96, %p97
      %p99 = scmp.ne.s32.totalorder %s85, %s86
      %p100 = scmp.eq.s32.totalorder %s24, 1
      %p101 = por %p99, %p100
      %p103 = scmp.ne.s32.totalorder %s86, %s102
      %p104 = scmp.eq.s32.totalorder %s24, 0
      %p105 = por %p103, %p104
      %p106 = scmp.le.s32.totalorder 1, %s18
      %p107 = scmp.lt.s32.totalorder %s18, 3
      %p108 = pnand %p106, %p107
      %p109 = pneg %p108
      // Predicated region
      $region9: #{tpu_custom_call.1} parent=5 // pred_check
        _
      $region10: #{tpu_custom_call.1} parent=5 // pred_check_branch
        %111 = sbr.rel (%p108) target = $region12
      $region11: #{tpu_custom_call.1} parent=5 // pred_region
        %s112 = ssub.s32 %s18, 1
      $region12: #{tpu_custom_call.1} parent=5 // pred_fallthru
        _
      %p113 = scmp.lt.s32.totalorder %s18, 2
      // Predicated region
      $region13: #{tpu_custom_call.1} parent=5 // pred_check
        %p114 = pneg %p113
      $region14: #{tpu_custom_call.1} parent=5 // pred_check_branch
        %116 = sbr.rel (%p114) target = $region16
      $region15: #{tpu_custom_call.1} parent=5 // pred_region
        // Predicated region
        $region17: #{tpu_custom_call.1} parent=15 // pred_check
          %p117 = pneg %p40
        $region18: #{tpu_custom_call.1} parent=15 // pred_check_branch
          %119 = sbr.rel (%p117) target = $region20
        $region19: #{tpu_custom_call.1} parent=15 // pred_region
          %s120 = sld [smem:[#allocation3 + %s18]]
          %p121 = scmp.lt.s32.totalorder %s120, 1
          %s122 = scalar_select %p121, %s120, 1
          %s123 = smul.addr %s122, 16
          %s124 = smul.addr %s123, 4
          %s125 = scalar_lea.vmem %s1, %s124
          %s126 = sld [smem:[#allocation3 + %s18]]
        $region20: #{tpu_custom_call.1} parent=15 // pred_fallthru
          _
        // Predicated region
        $region21: #{tpu_custom_call.1} parent=15 // pred_check
          %p127 = pneg %p66
        $region22: #{tpu_custom_call.1} parent=15 // pred_check_branch
          %129 = sbr.rel (%p127) target = $region24
        $region23: #{tpu_custom_call.1} parent=15 // pred_region
          %p130 = scmp.lt.s32.totalorder %s18, 1
          %s131 = scalar_select %p130, %s18, 1
          %s132 = smul.addr %s131, 8
          %s133 = scalar_lea.vmem %s2, %s132
        $region24: #{tpu_custom_call.1} parent=15 // pred_fallthru
          _
      $region16: #{tpu_custom_call.1} parent=5 // pred_fallthru
        _
      %p134 = scmp.le.s32.totalorder 1, %s18
      %p135 = scmp.lt.s32.totalorder %s18, 3
      %p136 = pnand %p134, %p135
      %p137 = pneg %p136
      // Predicated region
      $region25: #{tpu_custom_call.1} parent=5 // pred_check
        _
      $region26: #{tpu_custom_call.1} parent=5 // pred_check_branch
        %139 = sbr.rel (%p136) target = $region28
      $region27: #{tpu_custom_call.1} parent=5 // pred_region
        %s140 = ssub.s32 %s18, 1
        %s141 = sld [smem:[#allocation3 + %s23]]
        %p142 = scmp.lt.s32.totalorder %s141, 1
        %s143 = scalar_select %p142, %s141, 1
        %s144 = smul.addr %s143, 16
        %s145 = smul.addr %s144, 4
        %s146 = scalar_lea.vmem %s1, %s145
        %p147 = pneg %p46
        %p148 = pneg %p43
        %p149 = scmp.lt.s32.totalorder %s23, 1
        %s150 = scalar_select %p149, %s23, 1
        %s151 = smul.addr %s150, 8
        %s152 = scalar_lea.vmem %s2, %s151
        %p153 = pneg %p72
        %p154 = pneg %p69
        %p155 = pneg %p98
        %p156 = pneg %p95
        %s157 = sand.u32 %s85, 1
        %s158 = scalar_lea.sflag [#allocation5], %s157
        %s159 = sand.u32 %s85, 1
        %s160 = smul.addr %s159, 16
        %s161 = scalar_lea.vmem [#allocation4], %s160
        %s162 = sld [smem:[#allocation3 + %s23]]
        %p163 = scmp.lt.s32.totalorder %s162, 1
        %s164 = scalar_select %p163, %s162, 1
        %s165 = smul.addr %s164, 16
        %s166 = smul.addr %s165, 4
        %s167 = scalar_lea.vmem %s1, %s166
        %s168 = sld [smem:[#allocation3 + %s23]]
        %p169 = scmp.lt.s32.totalorder %s23, 1
        %s170 = scalar_select %p169, %s23, 1
        %s171 = smul.addr %s170, 8
        %s172 = scalar_lea.vmem %s2, %s171
        %v174 = vld [vmem:[%s172] sm:$0x1f]
        %v175 = vlaneseq
        %v176 = vshrl.u32 %v175, 7
        %v177 = vadd.s32 %v176, 8
        %v178 = vcvt.s32.f32 %v176
        %v179 = vcvt.s32.f32 %v177
        %v180 = vadd.f32 %v174, 0.25
        %v182 = vrot.slane %v180, 1
        %v184 = vmul.f32 %v174, %v182
        %v186 = vrot.slane %v184, 1
        %v188 = vadd.f32 %v174, %v186
        %vm189 = vcmp.ge.f32.partialorder %v188, -1.0
        %vm190 = vcmp.le.f32.partialorder %v188, 16.0
        %vm191 = vmand %vm189, %vm190
        %v192 = vmax.f32 %v188, 0.0
        %v193 = vmin.f32 %v192, 15.0
        %v194 = vlaneseq
        %v195 = vshrl.u32 %v194, 7
        %v196 = vsub.s32 0, %v195
        %v197 = vrot.slane %v193, %v196
        %v198 = vsub.f32 %v197, %v178
        %v199 = vsub.f32 %v197, %v179
        %v200 = vand.u32 2147483647, %v198
        %v201 = vand.u32 2147483647, %v199
        %v202 = vsub.f32 1.0, %v200
        %v203 = vsub.f32 1.0, %v201
        %v204 = vmax.f32 %v202, 0.0
        %v205 = vmax.f32 %v203, 0.0
        %v206 = vsel %vm191, 1, 0
        %v207 = vlaneseq
        %v208 = vshrl.u32 %v207, 7
        %v209 = vsub.s32 0, %v208
        %v210 = vrot.slane %v206, %v209
        %vm211 = vcmp.eq.s32.totalorder %v210, 1
        %v212 = vsel %vm211, %v204, 0.0
        %v213 = vsel %vm211, %v205, 0.0
        %v214 = vadd.f32 %v212, 0.0
        %v215 = vadd.f32 %v213, 0.0
        %v216 = vadd.f32 %v174, 0.75
        %v218 = vrot.slane %v216, 1
        %v220 = vmul.f32 %v174, %v218
        %v222 = vrot.slane %v220, 1
        %v224 = vadd.f32 %v174, %v222
        %vm225 = vcmp.ge.f32.partialorder %v224, -1.0
        %vm226 = vcmp.le.f32.partialorder %v224, 16.0
        %vm227 = vmand %vm225, %vm226
        %v228 = vmax.f32 %v224, 0.0
        %v229 = vmin.f32 %v228, 15.0
        %v230 = vlaneseq
        %v231 = vshrl.u32 %v230, 7
        %v232 = vsub.s32 0, %v231
        %v233 = vrot.slane %v229, %v232
        %v234 = vsub.f32 %v233, %v178
        %v235 = vsub.f32 %v233, %v179
        %v236 = vand.u32 2147483647, %v234
        %v237 = vand.u32 2147483647, %v235
        %v238 = vsub.f32 1.0, %v236
        %v239 = vsub.f32 1.0, %v237
        %v240 = vmax.f32 %v238, 0.0
        %v241 = vmax.f32 %v239, 0.0
        %v242 = vsel %vm227, 1, 0
        %v243 = vlaneseq
        %v244 = vshrl.u32 %v243, 7
        %v245 = vsub.s32 0, %v244
        %v246 = vrot.slane %v242, %v245
        %vm247 = vcmp.eq.s32.totalorder %v246, 1
        %v248 = vsel %vm247, %v240, 0.0
        %v249 = vsel %vm247, %v241, 0.0
        %v250 = vadd.f32 %v214, %v248
        %v251 = vadd.f32 %v215, %v249
        %v252 = vmul.f32 %v250, 0.25
        %v253 = vmul.f32 %v251, 0.25
        %v254 = vpack.c.bf16 %v253, %v252
        %v255 = vmul.f32 %v174, 0.25
        %v257 = vrot.slane %v255, 1
        %v259 = vadd.f32 %v174, %v257
        %vm260 = vcmp.ge.f32.partialorder %v259, -1.0
        %vm261 = vcmp.le.f32.partialorder %v259, 16.0
        %vm262 = vmand %vm260, %vm261
        %v263 = vmax.f32 %v259, 0.0
        %v264 = vmin.f32 %v263, 15.0
        %v265 = vlaneseq
        %v266 = vshrl.u32 %v265, 7
        %v267 = vsub.s32 3, %v266
        %v268 = vrot.slane %v264, %v267
        %v269 = vsub.f32 %v268, %v178
        %v270 = vsub.f32 %v268, %v179
        %v271 = vand.u32 2147483647, %v269
        %v272 = vand.u32 2147483647, %v270
        %v273 = vsub.f32 1.0, %v271
        %v274 = vsub.f32 1.0, %v272
        %v275 = vmax.f32 %v273, 0.0
        %v276 = vmax.f32 %v274, 0.0
        %v277 = vsel %vm262, 1, 0
        %v278 = vlaneseq
        %v279 = vshrl.u32 %v278, 7
        %v280 = vsub.s32 3, %v279
        %v281 = vrot.slane %v277, %v280
        %vm282 = vcmp.eq.s32.totalorder %v281, 1
        %v283 = vsel %vm282, %v275, 0.0
        %v284 = vsel %vm282, %v276, 0.0
        %v285 = vadd.f32 %v283, 0.0
        %v286 = vadd.f32 %v284, 0.0
        %v287 = vmul.f32 %v174, 0.75
        %v289 = vrot.slane %v287, 1
        %v291 = vadd.f32 %v174, %v289
        %vm292 = vcmp.ge.f32.partialorder %v291, -1.0
        %vm293 = vcmp.le.f32.partialorder %v291, 16.0
        %vm294 = vmand %vm292, %vm293
        %v295 = vmax.f32 %v291, 0.0
        %v296 = vmin.f32 %v295, 15.0
        %v297 = vlaneseq
        %v298 = vshrl.u32 %v297, 7
        %v299 = vsub.s32 3, %v298
        %v300 = vrot.slane %v296, %v299
        %v301 = vsub.f32 %v300, %v178
        %v302 = vsub.f32 %v300, %v179
        %v303 = vand.u32 2147483647, %v301
        %v304 = vand.u32 2147483647, %v302
        %v305 = vsub.f32 1.0, %v303
        %v306 = vsub.f32 1.0, %v304
        %v307 = vmax.f32 %v305, 0.0
        %v308 = vmax.f32 %v306, 0.0
        %v309 = vsel %vm294, 1, 0
        %v310 = vlaneseq
        %v311 = vshrl.u32 %v310, 7
        %v312 = vsub.s32 3, %v311
        %v313 = vrot.slane %v309, %v312
        %vm314 = vcmp.eq.s32.totalorder %v313, 1
        %v315 = vsel %vm314, %v307, 0.0
        %v316 = vsel %vm314, %v308, 0.0
        %v317 = vadd.f32 %v285, %v315
        %v318 = vadd.f32 %v286, %v316
        %v319 = vmul.f32 %v174, 1.25
        %v321 = vrot.slane %v319, 1
        %v323 = vadd.f32 %v174, %v321
        %vm324 = vcmp.ge.f32.partialorder %v323, -1.0
        %vm325 = vcmp.le.f32.partialorder %v323, 16.0
        %vm326 = vmand %vm324, %vm325
        %v327 = vmax.f32 %v323, 0.0
        %v328 = vmin.f32 %v327, 15.0
        %v329 = vlaneseq
        %v330 = vshrl.u32 %v329, 7
        %v331 = vsub.s32 3, %v330
        %v332 = vrot.slane %v328, %v331
        %v333 = vsub.f32 %v332, %v178
        %v334 = vsub.f32 %v332, %v179
        %v335 = vand.u32 2147483647, %v333
        %v336 = vand.u32 2147483647, %v334
        %v337 = vsub.f32 1.0, %v335
        %v338 = vsub.f32 1.0, %v336
        %v339 = vmax.f32 %v337, 0.0
        %v340 = vmax.f32 %v338, 0.0
        %v341 = vsel %vm326, 1, 0
        %v342 = vlaneseq
        %v343 = vshrl.u32 %v342, 7
        %v344 = vsub.s32 3, %v343
        %v345 = vrot.slane %v341, %v344
        %vm346 = vcmp.eq.s32.totalorder %v345, 1
        %v347 = vsel %vm346, %v339, 0.0
        %v348 = vsel %vm346, %v340, 0.0
        %v349 = vadd.f32 %v347, 0.0
        %v350 = vadd.f32 %v348, 0.0
        %v351 = vmul.f32 %v174, 1.75
        %v353 = vrot.slane %v351, 1
        %v355 = vadd.f32 %v174, %v353
        %vm356 = vcmp.ge.f32.partialorder %v355, -1.0
        %vm357 = vcmp.le.f32.partialorder %v355, 16.0
        %vm358 = vmand %vm356, %vm357
        %v359 = vmax.f32 %v355, 0.0
        %v360 = vmin.f32 %v359, 15.0
        %v361 = vlaneseq
        %v362 = vshrl.u32 %v361, 7
        %v363 = vsub.s32 3, %v362
        %v364 = vrot.slane %v360, %v363
        %v365 = vsub.f32 %v364, %v178
        %v366 = vsub.f32 %v364, %v179
        %v367 = vand.u32 2147483647, %v365
        %v368 = vand.u32 2147483647, %v366
        %v369 = vsub.f32 1.0, %v367
        %v370 = vsub.f32 1.0, %v368
        %v371 = vmax.f32 %v369, 0.0
        %v372 = vmax.f32 %v370, 0.0
        %v373 = vsel %vm358, 1, 0
        %v374 = vlaneseq
        %v375 = vshrl.u32 %v374, 7
        %v376 = vsub.s32 3, %v375
        %v377 = vrot.slane %v373, %v376
        %vm378 = vcmp.eq.s32.totalorder %v377, 1
        %v379 = vsel %vm378, %v371, 0.0
        %v380 = vsel %vm378, %v372, 0.0
        %v381 = vadd.f32 %v349, %v379
        %v382 = vadd.f32 %v350, %v380
        %v383 = vmul.f32 %v174, 2.25
        %v385 = vrot.slane %v383, 1
        %v387 = vadd.f32 %v174, %v385
        %vm388 = vcmp.ge.f32.partialorder %v387, -1.0
        %vm389 = vcmp.le.f32.partialorder %v387, 16.0
        %vm390 = vmand %vm388, %vm389
        %v391 = vmax.f32 %v387, 0.0
        %v392 = vmin.f32 %v391, 15.0
        %v393 = vlaneseq
        %v394 = vshrl.u32 %v393, 7
        %v395 = vsub.s32 3, %v394
        %v396 = vrot.slane %v392, %v395
        %v397 = vsub.f32 %v396, %v178
        %v398 = vsub.f32 %v396, %v179
        %v399 = vand.u32 2147483647, %v397
        %v400 = vand.u32 2147483647, %v398
        %v401 = vsub.f32 1.0, %v399
        %v402 = vsub.f32 1.0, %v400
        %v403 = vmax.f32 %v401, 0.0
        %v404 = vmax.f32 %v402, 0.0
        %v405 = vsel %vm390, 1, 0
        %v406 = vlaneseq
        %v407 = vshrl.u32 %v406, 7
        %v408 = vsub.s32 3, %v407
        %v409 = vrot.slane %v405, %v408
        %vm410 = vcmp.eq.s32.totalorder %v409, 1
        %v411 = vsel %vm410, %v403, 0.0
        %v412 = vsel %vm410, %v404, 0.0
        %v413 = vadd.f32 %v411, 0.0
        %v414 = vadd.f32 %v412, 0.0
        %v415 = vmul.f32 %v174, 2.75
        %v417 = vrot.slane %v415, 1
        %v419 = vadd.f32 %v174, %v417
        %vm420 = vcmp.ge.f32.partialorder %v419, -1.0
        %vm421 = vcmp.le.f32.partialorder %v419, 16.0
        %vm422 = vmand %vm420, %vm421
        %v423 = vmax.f32 %v419, 0.0
        %v424 = vmin.f32 %v423, 15.0
        %v425 = vlaneseq
        %v426 = vshrl.u32 %v425, 7
        %v427 = vsub.s32 3, %v426
        %v428 = vrot.slane %v424, %v427
        %v429 = vsub.f32 %v428, %v178
        %v430 = vsub.f32 %v428, %v179
        %v431 = vand.u32 2147483647, %v429
        %v432 = vand.u32 2147483647, %v430
        %v433 = vsub.f32 1.0, %v431
        %v434 = vsub.f32 1.0, %v432
        %v435 = vmax.f32 %v433, 0.0
        %v436 = vmax.f32 %v434, 0.0
        %v437 = vsel %vm422, 1, 0
        %v438 = vlaneseq
        %v439 = vshrl.u32 %v438, 7
        %v440 = vsub.s32 3, %v439
        %v441 = vrot.slane %v437, %v440
        %vm442 = vcmp.eq.s32.totalorder %v441, 1
        %v443 = vsel %vm442, %v435, 0.0
        %v444 = vsel %vm442, %v436, 0.0
        %v445 = vadd.f32 %v413, %v443
        %v446 = vadd.f32 %v414, %v444
        %v447 = vmul.f32 %v174, 3.25
        %v449 = vrot.slane %v447, 1
        %v451 = vadd.f32 %v174, %v449
        %vm452 = vcmp.ge.f32.partialorder %v451, -1.0
        %vm453 = vcmp.le.f32.partialorder %v451, 16.0
        %vm454 = vmand %vm452, %vm453
        %v455 = vmax.f32 %v451, 0.0
        %v456 = vmin.f32 %v455, 15.0
        %v457 = vlaneseq
        %v458 = vshrl.u32 %v457, 7
        %v459 = vsub.s32 3, %v458
        %v460 = vrot.slane %v456, %v459
        %v461 = vsub.f32 %v460, %v178
        %v462 = vsub.f32 %v460, %v179
        %v463 = vand.u32 2147483647, %v461
        %v464 = vand.u32 2147483647, %v462
        %v465 = vsub.f32 1.0, %v463
        %v466 = vsub.f32 1.0, %v464
        %v467 = vmax.f32 %v465, 0.0
        %v468 = vmax.f32 %v466, 0.0
        %v469 = vsel %vm454, 1, 0
        %v470 = vlaneseq
        %v471 = vshrl.u32 %v470, 7
        %v472 = vsub.s32 3, %v471
        %v473 = vrot.slane %v469, %v472
        %vm474 = vcmp.eq.s32.totalorder %v473, 1
        %v475 = vsel %vm474, %v467, 0.0
        %v476 = vsel %vm474, %v468, 0.0
        %v477 = vadd.f32 %v475, 0.0
        %v478 = vadd.f32 %v476, 0.0
        %v479 = vmul.f32 %v174, 3.75
        %v481 = vrot.slane %v479, 1
        %v483 = vadd.f32 %v174, %v481
        %vm484 = vcmp.ge.f32.partialorder %v483, -1.0
        %vm485 = vcmp.le.f32.partialorder %v483, 16.0
        %vm486 = vmand %vm484, %vm485
        %v487 = vmax.f32 %v483, 0.0
        %v488 = vmin.f32 %v487, 15.0
        %v489 = vlaneseq
        %v490 = vshrl.u32 %v489, 7
        %v491 = vsub.s32 3, %v490
        %v492 = vrot.slane %v488, %v491
        %v493 = vsub.f32 %v492, %v178
        %v494 = vsub.f32 %v492, %v179
        %v495 = vand.u32 2147483647, %v493
        %v496 = vand.u32 2147483647, %v494
        %v497 = vsub.f32 1.0, %v495
        %v498 = vsub.f32 1.0, %v496
        %v499 = vmax.f32 %v497, 0.0
        %v500 = vmax.f32 %v498, 0.0
        %v501 = vsel %vm486, 1, 0
        %v502 = vlaneseq
        %v503 = vshrl.u32 %v502, 7
        %v504 = vsub.s32 3, %v503
        %v505 = vrot.slane %v501, %v504
        %vm506 = vcmp.eq.s32.totalorder %v505, 1
        %v507 = vsel %vm506, %v499, 0.0
        %v508 = vsel %vm506, %v500, 0.0
        %v509 = vadd.f32 %v477, %v507
        %v510 = vadd.f32 %v478, %v508
        %v511 = vld [vmem:[%s167] sm:$0xf]
        %v512 = vld [vmem:[%s167 + $0x4] sm:$0xf]
        %v513 = vld [vmem:[%s167 + $0x8] sm:$0xf]
        %v514 = vld [vmem:[%s167 + $0xc] sm:$0xf]
        %v515 = vld [vmem:[%s167 + $0x10] sm:$0xf]
        %v516 = vld [vmem:[%s167 + $0x14] sm:$0xf]
        %v517 = vld [vmem:[%s167 + $0x18] sm:$0xf]
        %v518 = vld [vmem:[%s167 + $0x1c] sm:$0xf]
        %v519 = vld [vmem:[%s167 + $0x20] sm:$0xf]
        %v520 = vld [vmem:[%s167 + $0x24] sm:$0xf]
        %v521 = vld [vmem:[%s167 + $0x28] sm:$0xf]
        %v522 = vld [vmem:[%s167 + $0x2c] sm:$0xf]
        %v523 = vld [vmem:[%s167 + $0x30] sm:$0xf]
        %v524 = vld [vmem:[%s167 + $0x34] sm:$0xf]
        %v525 = vld [vmem:[%s167 + $0x38] sm:$0xf]
        %v526 = vld [vmem:[%s167 + $0x3c] sm:$0xf]
        %v543 = vunpack.c.l.b16 %v511
        %v544 = vunpack.c.l.b16 %v512
        %v545 = vunpack.c.l.b16 %v513
        %v546 = vunpack.c.l.b16 %v514
        %v547 = vunpack.c.l.b16 %v515
        %v548 = vunpack.c.l.b16 %v516
        %v549 = vunpack.c.l.b16 %v517
        %v550 = vunpack.c.l.b16 %v518
        %v551 = vunpack.c.l.b16 %v519
        %v552 = vunpack.c.l.b16 %v520
        %v553 = vunpack.c.l.b16 %v521
        %v554 = vunpack.c.l.b16 %v522
        %v555 = vunpack.c.l.b16 %v523
        %v556 = vunpack.c.l.b16 %v524
        %v557 = vunpack.c.l.b16 %v525
        %v558 = vunpack.c.l.b16 %v526
        %v559 = vpack.c.b16 %v544, %v543
        %v560 = vpack.c.b16 %v546, %v545
        %v561 = vpack.c.b16 %v548, %v547
        %v562 = vpack.c.b16 %v550, %v549
        %v563 = vpack.c.b16 %v552, %v551
        %v564 = vpack.c.b16 %v554, %v553
        %v565 = vpack.c.b16 %v556, %v555
        %v566 = vpack.c.b16 %v558, %v557
        %vm567 = vcmask 130048
        %v569 = vsel %vm567, %v559, 0
        %v572 = vsel %vm567, %v560, 0
        %v575 = vsel %vm567, %v561, 0
        %v578 = vsel %vm567, %v562, 0
        %v581 = vsel %vm567, %v563, 0
        %v584 = vsel %vm567, %v564, 0
        %v587 = vsel %vm567, %v565, 0
        %v590 = vsel %vm567, %v566, 0
        %592 = vmatprep.subr.bf16.mxu0 0
        %593 = vmatpush1.bf16.msra.mxu0 %v254
        %594 = vmatprep.subr.bf16.mxu0 0
        %595 = vmatpush1.bf16.msra.mxu0 0
        %596 = vmatprep.subr.bf16.mxu0 0
        %597 = vmatpush1.bf16.msra.mxu0 0
        %598 = vmatprep.subr.bf16.mxu0 0
        %599 = vmatpush1.bf16.msra.mxu0 0
        %600 = vmatprep.subr.bf16.mxu0 0
        %601 = vmatpush1.bf16.msra.mxu0 0
        %602 = vmatprep.subr.bf16.mxu0 0
        %603 = vmatpush1.bf16.msra.mxu0 0
        %604 = vmatprep.subr.bf16.mxu0 0
        %605 = vmatpush1.bf16.msra.mxu0 0
        %606 = vmatprep.subr.bf16.mxu0 0
        %607 = vmatpush1.bf16.msra.mxu0 0
        %608 = vmatprep.subr.bf16.mxu0 0
        %609 = vmatpush1.bf16.msra.mxu0 0
        %610 = vmatprep.subr.bf16.mxu0 0
        %611 = vmatpush1.bf16.msra.mxu0 0
        %612 = vmatprep.subr.bf16.mxu0 0
        %613 = vmatpush1.bf16.msra.mxu0 0
        %614 = vmatprep.subr.bf16.mxu0 0
        %615 = vmatpush1.bf16.msra.mxu0 0
        %616 = vmatprep.subr.bf16.mxu0 0
        %617 = vmatpush1.bf16.msra.mxu0 0
        %618 = vmatprep.subr.bf16.mxu0 0
        %619 = vmatpush1.bf16.msra.mxu0 0
        %620 = vmatprep.subr.bf16.mxu0 0
        %621 = vmatpush1.bf16.msra.mxu0 0
        %622 = vmatprep.subr.bf16.mxu0 0
        %623 = vmatpush1.bf16.msra.mxu0 0
        %624 = vmatprep.mubr.bf16.mxu0 0
        %625 = vmatmul.mubr.bf16.gmra.mrb[0].mxu0 %v569
        %v626 = vpop.f32.mrb[0].mxu0
        %v627 = vadd.f32 0.0, %v626
        %v628 = vpop.f32.mrb[0].mxu0
        %v629 = vpop.f32.mrb[0].mxu0
        %v630 = vadd.f32 0.0, %v629
        %v631 = vpop.f32.mrb[0].mxu0
        %632 = vmatprep.mubr.bf16.mxu0 0
        %633 = vmatmul.mubr.bf16.gmra.mrb[0].mxu0 %v572
        %v634 = vpop.f32.mrb[0].mxu0
        %v635 = vadd.f32 0.0, %v634
        %v636 = vpop.f32.mrb[0].mxu0
        %v637 = vpop.f32.mrb[0].mxu0
        %v638 = vadd.f32 0.0, %v637
        %v639 = vpop.f32.mrb[0].mxu0
        %640 = vmatprep.mubr.bf16.mxu0 0
        %641 = vmatmul.mubr.bf16.gmra.mrb[0].mxu0 %v575
        %v642 = vpop.f32.mrb[0].mxu0
        %v643 = vadd.f32 0.0, %v642
        %v644 = vpop.f32.mrb[0].mxu0
        %v645 = vpop.f32.mrb[0].mxu0
        %v646 = vadd.f32 0.0, %v645
        %v647 = vpop.f32.mrb[0].mxu0
        %648 = vmatprep.mubr.bf16.mxu0 0
        %649 = vmatmul.mubr.bf16.gmra.mrb[0].mxu0 %v578
        %v650 = vpop.f32.mrb[0].mxu0
        %v651 = vadd.f32 0.0, %v650
        %v652 = vpop.f32.mrb[0].mxu0
        %v653 = vpop.f32.mrb[0].mxu0
        %v654 = vadd.f32 0.0, %v653
        %v655 = vpop.f32.mrb[0].mxu0
        %656 = vmatprep.mubr.bf16.mxu0 0
        %657 = vmatmul.mubr.bf16.gmra.mrb[0].mxu0 %v581
        %v658 = vpop.f32.mrb[0].mxu0
        %v659 = vadd.f32 0.0, %v658
        %v660 = vpop.f32.mrb[0].mxu0
        %v661 = vpop.f32.mrb[0].mxu0
        %v662 = vadd.f32 0.0, %v661
        %v663 = vpop.f32.mrb[0].mxu0
        %664 = vmatprep.mubr.bf16.mxu0 0
        %665 = vmatmul.mubr.bf16.gmra.mrb[0].mxu0 %v584
        %v666 = vpop.f32.mrb[0].mxu0
        %v667 = vadd.f32 0.0, %v666
        %v668 = vpop.f32.mrb[0].mxu0
        %v669 = vpop.f32.mrb[0].mxu0
        %v670 = vadd.f32 0.0, %v669
        %v671 = vpop.f32.mrb[0].mxu0
        %672 = vmatprep.mubr.bf16.mxu0 0
        %673 = vmatmul.mubr.bf16.gmra.mrb[0].mxu0 %v587
        %v674 = vpop.f32.mrb[0].mxu0
        %v675 = vadd.f32 0.0, %v674
        %v676 = vpop.f32.mrb[0].mxu0
        %v677 = vpop.f32.mrb[0].mxu0
        %v678 = vadd.f32 0.0, %v677
        %v679 = vpop.f32.mrb[0].mxu0
        %680 = vmatprep.mubr.bf16.mxu0 0
        %681 = vmatmul.mubr.bf16.gmra.mrb[0].mxu0 %v590
        %v682 = vpop.f32.mrb[0].mxu0
        %v683 = vadd.f32 0.0, %v682
        %v684 = vpop.f32.mrb[0].mxu0
        %v685 = vpop.f32.mrb[0].mxu0
        %v686 = vadd.f32 0.0, %v685
        %v687 = vpop.f32.mrb[0].mxu0
        %688 = vdwg.mxu0
        %v689 = vmul.f32 %v627, %v317
        %v690 = vmul.f32 %v630, %v318
        %v691 = vmul.f32 %v635, %v317
        %v692 = vmul.f32 %v638, %v318
        %v693 = vmul.f32 %v643, %v317
        %v694 = vmul.f32 %v646, %v318
        %v695 = vmul.f32 %v651, %v317
        %v696 = vmul.f32 %v654, %v318
        %v697 = vmul.f32 %v659, %v317
        %v698 = vmul.f32 %v662, %v318
        %v699 = vmul.f32 %v667, %v317
        %v700 = vmul.f32 %v670, %v318
        %v701 = vmul.f32 %v675, %v317
        %v702 = vmul.f32 %v678, %v318
        %v703 = vmul.f32 %v683, %v317
        %v704 = vmul.f32 %v686, %v318
        %v705 = vadd.f32 %v689, %v690
        %v706 = vrot.slane %v705, 4
        %v707 = vadd.f32 %v705, %v706
        %v708 = vrot.slane %v707, 2
        %v709 = vadd.f32 %v707, %v708
        %v710 = vrot.slane %v709, 1
        %v711 = vadd.f32 %v709, %v710
        %v712 = vadd.f32 %v691, %v692
        %v713 = vrot.slane %v712, 4
        %v714 = vadd.f32 %v712, %v713
        %v715 = vrot.slane %v714, 2
        %v716 = vadd.f32 %v714, %v715
        %v717 = vrot.slane %v716, 1
        %v718 = vadd.f32 %v716, %v717
        %v719 = vadd.f32 %v693, %v694
        %v720 = vrot.slane %v719, 4
        %v721 = vadd.f32 %v719, %v720
        %v722 = vrot.slane %v721, 2
        %v723 = vadd.f32 %v721, %v722
        %v724 = vrot.slane %v723, 1
        %v725 = vadd.f32 %v723, %v724
        %v726 = vadd.f32 %v695, %v696
        %v727 = vrot.slane %v726, 4
        %v728 = vadd.f32 %v726, %v727
        %v729 = vrot.slane %v728, 2
        %v730 = vadd.f32 %v728, %v729
        %v731 = vrot.slane %v730, 1
        %v732 = vadd.f32 %v730, %v731
        %v733 = vadd.f32 %v697, %v698
        %v734 = vrot.slane %v733, 4
        %v735 = vadd.f32 %v733, %v734
        %v736 = vrot.slane %v735, 2
        %v737 = vadd.f32 %v735, %v736
        %v738 = vrot.slane %v737, 1
        %v739 = vadd.f32 %v737, %v738
        %v740 = vadd.f32 %v699, %v700
        %v741 = vrot.slane %v740, 4
        %v742 = vadd.f32 %v740, %v741
        %v743 = vrot.slane %v742, 2
        %v744 = vadd.f32 %v742, %v743
        %v745 = vrot.slane %v744, 1
        %v746 = vadd.f32 %v744, %v745
        %v747 = vadd.f32 %v701, %v702
        %v748 = vrot.slane %v747, 4
        %v749 = vadd.f32 %v747, %v748
        %v750 = vrot.slane %v749, 2
        %v751 = vadd.f32 %v749, %v750
        %v752 = vrot.slane %v751, 1
        %v753 = vadd.f32 %v751, %v752
        %v754 = vadd.f32 %v703, %v704
        %v755 = vrot.slane %v754, 4
        %v756 = vadd.f32 %v754, %v755
        %v757 = vrot.slane %v756, 2
        %v758 = vadd.f32 %v756, %v757
        %v759 = vrot.slane %v758, 1
        %v760 = vadd.f32 %v758, %v759
        %v761 = vmul.f32 %v627, %v381
        %v762 = vmul.f32 %v630, %v382
        %v763 = vmul.f32 %v635, %v381
        %v764 = vmul.f32 %v638, %v382
        %v765 = vmul.f32 %v643, %v381
        %v766 = vmul.f32 %v646, %v382
        %v767 = vmul.f32 %v651, %v381
        %v768 = vmul.f32 %v654, %v382
        %v769 = vmul.f32 %v659, %v381
        %v770 = vmul.f32 %v662, %v382
        %v771 = vmul.f32 %v667, %v381
        %v772 = vmul.f32 %v670, %v382
        %v773 = vmul.f32 %v675, %v381
        %v774 = vmul.f32 %v678, %v382
        %v775 = vmul.f32 %v683, %v381
        %v776 = vmul.f32 %v686, %v382
        %v777 = vadd.f32 %v761, %v762
        %v778 = vrot.slane %v777, 4
        %v779 = vadd.f32 %v777, %v778
        %v780 = vrot.slane %v779, 2
        %v781 = vadd.f32 %v779, %v780
        %v782 = vrot.slane %v781, 1
        %v783 = vadd.f32 %v781, %v782
        %v784 = vadd.f32 %v763, %v764
        %v785 = vrot.slane %v784, 4
        %v786 = vadd.f32 %v784, %v785
        %v787 = vrot.slane %v786, 2
        %v788 = vadd.f32 %v786, %v787
        %v789 = vrot.slane %v788, 1
        %v790 = vadd.f32 %v788, %v789
        %v791 = vadd.f32 %v765, %v766
        %v792 = vrot.slane %v791, 4
        %v793 = vadd.f32 %v791, %v792
        %v794 = vrot.slane %v793, 2
        %v795 = vadd.f32 %v793, %v794
        %v796 = vrot.slane %v795, 1
        %v797 = vadd.f32 %v795, %v796
        %v798 = vadd.f32 %v767, %v768
        %v799 = vrot.slane %v798, 4
        %v800 = vadd.f32 %v798, %v799
        %v801 = vrot.slane %v800, 2
        %v802 = vadd.f32 %v800, %v801
        %v803 = vrot.slane %v802, 1
        %v804 = vadd.f32 %v802, %v803
        %v805 = vadd.f32 %v769, %v770
        %v806 = vrot.slane %v805, 4
        %v807 = vadd.f32 %v805, %v806
        %v808 = vrot.slane %v807, 2
        %v809 = vadd.f32 %v807, %v808
        %v810 = vrot.slane %v809, 1
        %v811 = vadd.f32 %v809, %v810
        %v812 = vadd.f32 %v771, %v772
        %v813 = vrot.slane %v812, 4
        %v814 = vadd.f32 %v812, %v813
        %v815 = vrot.slane %v814, 2
        %v816 = vadd.f32 %v814, %v815
        %v817 = vrot.slane %v816, 1
        %v818 = vadd.f32 %v816, %v817
        %v819 = vadd.f32 %v773, %v774
        %v820 = vrot.slane %v819, 4
        %v821 = vadd.f32 %v819, %v820
        %v822 = vrot.slane %v821, 2
        %v823 = vadd.f32 %v821, %v822
        %v824 = vrot.slane %v823, 1
        %v825 = vadd.f32 %v823, %v824
        %v826 = vadd.f32 %v775, %v776
        %v827 = vrot.slane %v826, 4
        %v828 = vadd.f32 %v826, %v827
        %v829 = vrot.slane %v828, 2
        %v830 = vadd.f32 %v828, %v829
        %v831 = vrot.slane %v830, 1
        %v832 = vadd.f32 %v830, %v831
        %v833 = vmax.f32 %v711, %v783
        %v834 = vmax.f32 %v718, %v790
        %v835 = vmax.f32 %v725, %v797
        %v836 = vmax.f32 %v732, %v804
        %v837 = vmax.f32 %v739, %v811
        %v838 = vmax.f32 %v746, %v818
        %v839 = vmax.f32 %v753, %v825
        %v840 = vmax.f32 %v760, %v832
        %vm849 = vcmask 1041409
        %v850 = vsel %vm849, %v834, %v833
        %vm851 = vcmask 1042434
        %v852 = vsel %vm851, %v835, %v850
        %vm853 = vcmask 1043459
        %v854 = vsel %vm853, %v836, %v852
        %vm855 = vcmask 1044484
        %v856 = vsel %vm855, %v837, %v854
        %vm857 = vcmask 1045509
        %v858 = vsel %vm857, %v838, %v856
        %vm859 = vcmask 1046534
        %v860 = vsel %vm859, %v839, %v858
        %vm861 = vcmask 1047559
        %v862 = vsel %vm861, %v840, %v860
        %864 = vst [vmem:[%s161] sm:$0xff] %v862
        %v865 = vmul.f32 %v627, %v445
        %v866 = vmul.f32 %v630, %v446
        %v867 = vmul.f32 %v635, %v445
        %v868 = vmul.f32 %v638, %v446
        %v869 = vmul.f32 %v643, %v445
        %v870 = vmul.f32 %v646, %v446
        %v871 = vmul.f32 %v651, %v445
        %v872 = vmul.f32 %v654, %v446
        %v873 = vmul.f32 %v659, %v445
        %v874 = vmul.f32 %v662, %v446
        %v875 = vmul.f32 %v667, %v445
        %v876 = vmul.f32 %v670, %v446
        %v877 = vmul.f32 %v675, %v445
        %v878 = vmul.f32 %v678, %v446
        %v879 = vmul.f32 %v683, %v445
        %v880 = vmul.f32 %v686, %v446
        %v881 = vadd.f32 %v865, %v866
        %v882 = vrot.slane %v881, 4
        %v883 = vadd.f32 %v881, %v882
        %v884 = vrot.slane %v883, 2
        %v885 = vadd.f32 %v883, %v884
        %v886 = vrot.slane %v885, 1
        %v887 = vadd.f32 %v885, %v886
        %v888 = vadd.f32 %v867, %v868
        %v889 = vrot.slane %v888, 4
        %v890 = vadd.f32 %v888, %v889
        %v891 = vrot.slane %v890, 2
        %v892 = vadd.f32 %v890, %v891
        %v893 = vrot.slane %v892, 1
        %v894 = vadd.f32 %v892, %v893
        %v895 = vadd.f32 %v869, %v870
        %v896 = vrot.slane %v895, 4
        %v897 = vadd.f32 %v895, %v896
        %v898 = vrot.slane %v897, 2
        %v899 = vadd.f32 %v897, %v898
        %v900 = vrot.slane %v899, 1
        %v901 = vadd.f32 %v899, %v900
        %v902 = vadd.f32 %v871, %v872
        %v903 = vrot.slane %v902, 4
        %v904 = vadd.f32 %v902, %v903
        %v905 = vrot.slane %v904, 2
        %v906 = vadd.f32 %v904, %v905
        %v907 = vrot.slane %v906, 1
        %v908 = vadd.f32 %v906, %v907
        %v909 = vadd.f32 %v873, %v874
        %v910 = vrot.slane %v909, 4
        %v911 = vadd.f32 %v909, %v910
        %v912 = vrot.slane %v911, 2
        %v913 = vadd.f32 %v911, %v912
        %v914 = vrot.slane %v913, 1
        %v915 = vadd.f32 %v913, %v914
        %v916 = vadd.f32 %v875, %v876
        %v917 = vrot.slane %v916, 4
        %v918 = vadd.f32 %v916, %v917
        %v919 = vrot.slane %v918, 2
        %v920 = vadd.f32 %v918, %v919
        %v921 = vrot.slane %v920, 1
        %v922 = vadd.f32 %v920, %v921
        %v923 = vadd.f32 %v877, %v878
        %v924 = vrot.slane %v923, 4
        %v925 = vadd.f32 %v923, %v924
        %v926 = vrot.slane %v925, 2
        %v927 = vadd.f32 %v925, %v926
        %v928 = vrot.slane %v927, 1
        %v929 = vadd.f32 %v927, %v928
        %v930 = vadd.f32 %v879, %v880
        %v931 = vrot.slane %v930, 4
        %v932 = vadd.f32 %v930, %v931
        %v933 = vrot.slane %v932, 2
        %v934 = vadd.f32 %v932, %v933
        %v935 = vrot.slane %v934, 1
        %v936 = vadd.f32 %v934, %v935
        %v937 = vmul.f32 %v627, %v509
        %v938 = vmul.f32 %v630, %v510
        %v939 = vmul.f32 %v635, %v509
        %v940 = vmul.f32 %v638, %v510
        %v941 = vmul.f32 %v643, %v509
        %v942 = vmul.f32 %v646, %v510
        %v943 = vmul.f32 %v651, %v509
        %v944 = vmul.f32 %v654, %v510
        %v945 = vmul.f32 %v659, %v509
        %v946 = vmul.f32 %v662, %v510
        %v947 = vmul.f32 %v667, %v509
        %v948 = vmul.f32 %v670, %v510
        %v949 = vmul.f32 %v675, %v509
        %v950 = vmul.f32 %v678, %v510
        %v951 = vmul.f32 %v683, %v509
        %v952 = vmul.f32 %v686, %v510
        %v953 = vadd.f32 %v937, %v938
        %v954 = vrot.slane %v953, 4
        %v955 = vadd.f32 %v953, %v954
        %v956 = vrot.slane %v955, 2
        %v957 = vadd.f32 %v955, %v956
        %v958 = vrot.slane %v957, 1
        %v959 = vadd.f32 %v957, %v958
        %v960 = vadd.f32 %v939, %v940
        %v961 = vrot.slane %v960, 4
        %v962 = vadd.f32 %v960, %v961
        %v963 = vrot.slane %v962, 2
        %v964 = vadd.f32 %v962, %v963
        %v965 = vrot.slane %v964, 1
        %v966 = vadd.f32 %v964, %v965
        %v967 = vadd.f32 %v941, %v942
        %v968 = vrot.slane %v967, 4
        %v969 = vadd.f32 %v967, %v968
        %v970 = vrot.slane %v969, 2
        %v971 = vadd.f32 %v969, %v970
        %v972 = vrot.slane %v971, 1
        %v973 = vadd.f32 %v971, %v972
        %v974 = vadd.f32 %v943, %v944
        %v975 = vrot.slane %v974, 4
        %v976 = vadd.f32 %v974, %v975
        %v977 = vrot.slane %v976, 2
        %v978 = vadd.f32 %v976, %v977
        %v979 = vrot.slane %v978, 1
        %v980 = vadd.f32 %v978, %v979
        %v981 = vadd.f32 %v945, %v946
        %v982 = vrot.slane %v981, 4
        %v983 = vadd.f32 %v981, %v982
        %v984 = vrot.slane %v983, 2
        %v985 = vadd.f32 %v983, %v984
        %v986 = vrot.slane %v985, 1
        %v987 = vadd.f32 %v985, %v986
        %v988 = vadd.f32 %v947, %v948
        %v989 = vrot.slane %v988, 4
        %v990 = vadd.f32 %v988, %v989
        %v991 = vrot.slane %v990, 2
        %v992 = vadd.f32 %v990, %v991
        %v993 = vrot.slane %v992, 1
        %v994 = vadd.f32 %v992, %v993
        %v995 = vadd.f32 %v949, %v950
        %v996 = vrot.slane %v995, 4
        %v997 = vadd.f32 %v995, %v996
        %v998 = vrot.slane %v997, 2
        %v999 = vadd.f32 %v997, %v998
        %v1000 = vrot.slane %v999, 1
        %v1001 = vadd.f32 %v999, %v1000
        %v1002 = vadd.f32 %v951, %v952
        %v1003 = vrot.slane %v1002, 4
        %v1004 = vadd.f32 %v1002, %v1003
        %v1005 = vrot.slane %v1004, 2
        %v1006 = vadd.f32 %v1004, %v1005
        %v1007 = vrot.slane %v1006, 1
        %v1008 = vadd.f32 %v1006, %v1007
        %v1009 = vmax.f32 %v887, %v959
        %v1010 = vmax.f32 %v894, %v966
        %v1011 = vmax.f32 %v901, %v973
        %v1012 = vmax.f32 %v908, %v980
        %v1013 = vmax.f32 %v915, %v987
        %v1014 = vmax.f32 %v922, %v994
        %v1015 = vmax.f32 %v929, %v1001
        %v1016 = vmax.f32 %v936, %v1008
        %v1025 = vsel %vm849, %v1010, %v1009
        %v1026 = vsel %vm851, %v1011, %v1025
        %v1027 = vsel %vm853, %v1012, %v1026
        %v1028 = vsel %vm855, %v1013, %v1027
        %v1029 = vsel %vm857, %v1014, %v1028
        %v1030 = vsel %vm859, %v1015, %v1029
        %v1031 = vsel %vm861, %v1016, %v1030
        %s1033 = scalar_lea.vmem %s161, 8 [#allocation4]
        %1034 = vst [vmem:[%s1033] sm:$0xff] %v1031
        %s1035 = sand.u32 %s85, 1
        %s1036 = scalar_lea.sflag [#allocation5], %s1035
        %s1037 = sand.u32 %s85, 1
        %s1038 = smul.addr %s1037, 16
        %s1039 = scalar_lea.vmem [#allocation4], %s1038
        // Predicated region
        $region29: #{tpu_custom_call.1} parent=27 // pred_check
          %p1040 = pneg %p95
        $region30: #{tpu_custom_call.1} parent=27 // pred_check_branch
          %1042 = sbr.rel (%p1040) target = $region32
        $region31: #{tpu_custom_call.1} parent=27 // pred_region
          %s1044 = ssub.s32 256, 256
          %1045 = vsyncadd %s1036, %s1044
          %s1046 = smul.addr %s23, 2
          %s1047 = smul.addr %s1046, 128
          %s1048 = scalar_lea.hbm %s3, %s1047
          %s1049 = sshll.u32 %s1039, 4
          %s1050 = int_to_ptr.vmem [resolvable:$true] %s1049
          %1055 = dma.vmem_to_hbm [thread:$0]  %s1050, 256, %s1048, %s1036, 128, 128, 8
        $region32: #{tpu_custom_call.1} parent=27 // pred_fallthru
          _
      $region28: #{tpu_custom_call.1} parent=5 // pred_fallthru
        _
      %p1056 = scmp.le.s32.totalorder 2, %s18
      // Predicated region
      $region33: #{tpu_custom_call.1} parent=5 // pred_check
        %p1057 = pneg %p1056
      $region34: #{tpu_custom_call.1} parent=5 // pred_check_branch
        %1059 = sbr.rel (%p1057) target = $region36
      $region35: #{tpu_custom_call.1} parent=5 // pred_region
        %s1060 = ssub.s32 %s18, 2
        // Predicated region
        $region37: #{tpu_custom_call.1} parent=35 // pred_check
          %p1061 = pneg %p101
        $region38: #{tpu_custom_call.1} parent=35 // pred_check_branch
          %1063 = sbr.rel (%p1061) target = $region40
        $region39: #{tpu_custom_call.1} parent=35 // pred_region
          %s1064 = sand.u32 %s86, 1
          %s1065 = scalar_lea.sflag [#allocation5], %s1064
          %s1066 = sand.u32 %s86, 1
          %s1067 = smul.addr %s1066, 16
          %s1068 = scalar_lea.vmem [#allocation4], %s1067
          %1069 = dma.done %s1065, 256
        $region40: #{tpu_custom_call.1} parent=35 // pred_fallthru
          _
      $region36: #{tpu_custom_call.1} parent=5 // pred_fallthru
        _
    $region6: #{tpu_custom_call.1} parent=1 // loop_footer
      %s22 = sadd.s32 1, %s18
    $region7: #{tpu_custom_call.1} parent=1 // loop_footer_branch
      %17 = sbr.rel target = $region3
    $region8: #{tpu_custom_call.1} parent=1 // loop_exit
      _
    %1070 = vsyncpa [#allocation5], 1
    %s1071 = scalar_lea.sflag [#allocation5], 1
    %1072 = vsyncpa %s1071, 1

</llo_original>
